<compile_context>
chip_gen: v6e
topology: v6e:2x2x1
jax: 0.10.0
libtpu: 0.0.40
codegen_flags: <defaults>
</compile_context>

<pallas_src>
from functools import partial

import jax
import jax.numpy as jnp
from jax.experimental import pallas as pl
from jax.experimental.pallas import tpu as pltpu

EPS = 1e-5
VEC_W = 512      # lane width of the packed per-feature-vector table
OUT_PAD = 128    # lane-dense padded output width (num_classes <= OUT_PAD)


# --------------------------------------------------------------------------
# Pallas kernel
# --------------------------------------------------------------------------
def _make_kernel(num_classes, matmul_dtype):
    relu = lambda v: jnp.maximum(v, 0.0)

    def dot(a, w):
        # bf16 (default) matmul operands, f32 accumulation on the MXU.
        return jnp.dot(a.astype(matmul_dtype), w.astype(matmul_dtype),
                       preferred_element_type=jnp.float32)

    def bn(h, g, b):
        # BatchNorm1d, training mode, folded to per-feature scale/shift:
        #   s = g * rsqrt(var + eps),  t = b - mu * s,  out = h * s + t
        # one-pass biased variance E[h^2] - mu^2; all statistics in f32.
        inv_n = 1.0 / h.shape[0]
        mu = jnp.sum(h, axis=0, keepdims=True) * inv_n
        ex2 = jnp.sum(h * h, axis=0, keepdims=True) * inv_n
        var = jnp.maximum(ex2 - mu * mu, 0.0)
        s = g * jax.lax.rsqrt(var + EPS)
        return h * s + (b - mu * s)

    def kernel(x_ref, w1r_ref, w2_ref, rw2_ref, w3_ref, w4_ref, w5_ref,
               w6_ref, w7_ref, vec_ref, o_ref):
        def vrow(r, d):  # static slice of the packed vector table -> (1, d)
            return vec_ref[r:r + 1, 0:d]

        x = x_ref[...]

        # ---- stage 1: classifier[0:4] and residual1 fused (both consume x) ----
        h0 = bn(dot(x, w1r_ref[...]), vrow(0, 256), vrow(1, 256))      # (B, 256)
        h = relu(h0[:, :128]) + h0[:, 128:256]        # ReLU branch + BN residual

        # ---- stage 2: classifier[4:8] + residual2 ----
        h2 = relu(bn(dot(h, w2_ref[...]), vrow(2, 256), vrow(3, 256)))
        r2 = bn(dot(h2, rw2_ref[...]), vrow(4, 256), vrow(5, 256))
        h = h2 + r2

        # ---- stage 3: classifier[8:] ----
        h = relu(bn(dot(h, w3_ref[...]), vrow(6, 512), vrow(7, 512)))    # 256->512
        h = relu(bn(dot(h, w4_ref[...]), vrow(8, 256), vrow(9, 256)))    # 512->256
        h = relu(bn(dot(h, w5_ref[...]), vrow(10, 128), vrow(11, 128)))  # 256->128
        h = relu(bn(dot(h, w6_ref[...]), vrow(12, 64), vrow(13, 64)))    # 128->64
        h = dot(h, w7_ref[...]) + vrow(14, OUT_PAD)   # 64 -> nc, padded to 128 lanes

        # ---- LayerNorm over the real num_classes lanes (pad lanes are exactly 0
        #      because w7/b7 pad columns are zero, so the plain lane-sum is exact;
        #      the variance term needs an explicit lane mask) ----
        lane = jax.lax.broadcasted_iota(jnp.int32, (1, OUT_PAD), 1)
        cmask = (lane < num_classes).astype(jnp.float32)
        inv_c = 1.0 / num_classes
        mu = jnp.sum(h, axis=-1, keepdims=True) * inv_c
        d = h - mu
        var = jnp.sum(d * d * cmask, axis=-1, keepdims=True) * inv_c
        o_ref[...] = (d * jax.lax.rsqrt(var + EPS) * vrow(15, OUT_PAD)
                      + vrow(16, OUT_PAD))

    return kernel


# --------------------------------------------------------------------------
# Parameter packing: raw (PyTorch-style) params -> TPU-friendly operands
# --------------------------------------------------------------------------
def pack_params(raw_params, *, num_classes, matmul_dtype=jnp.bfloat16):
    (w1, b1, g1, be1,
     w2, b2, g2, be2,
     w3, b3, g3, be3,
     w4, b4, g4, be4,
     w5, b5, g5, be5,
     w6, b6, g6, be6,
     w7, b7,
     rw1, rb1, rg1, rbe1,
     rw2, rb2, rg2, rbe2,
     lng, lnb) = raw_params
    assert num_classes <= OUT_PAD
    del b1, b2, b3, b4, b5, b6, rb1, rb2   # cancelled exactly by training-mode BN

    def row(v):
        v = jnp.asarray(v, jnp.float32).reshape(1, -1)
        return jnp.pad(v, ((0, 0), (0, VEC_W - v.shape[1])))

    vec = jnp.concatenate([
        row(jnp.concatenate([g1.reshape(-1), rg1.reshape(-1)])),    # 0
        row(jnp.concatenate([be1.reshape(-1), rbe1.reshape(-1)])),  # 1
        row(g2), row(be2),                                          # 2, 3
        row(rg2), row(rbe2),                                        # 4, 5
        row(g3), row(be3),                                          # 6, 7
        row(g4), row(be4),                                          # 8, 9
        row(g5), row(be5),                                          # 10, 11
        row(g6), row(be6),                                          # 12, 13
        row(b7), row(lng), row(lnb),                                # 14, 15, 16
    ], axis=0)

    w7_pad = jnp.pad(w7, ((0, 0), (0, OUT_PAD - num_classes)))
    # The in-kernel LayerNorm mean is an unmasked 128-lane sum; it is only exact
    # because the padded w7 columns (and padded b7 lanes) are exactly zero.
    assert bool(jnp.all(w7_pad[:, num_classes:] == 0.0)), \
        "w7 pad columns must be exactly zero (LayerNorm mean relies on it)"

    wd = matmul_dtype
    weights = (
        jnp.concatenate([w1, rw1], axis=1).astype(wd),   # w1r: (in, 256)
        w2.astype(wd), rw2.astype(wd),
        w3.astype(wd), w4.astype(wd),
        w5.astype(wd), w6.astype(wd),
        w7_pad.astype(wd),
    )
    return dict(weights=weights, vec=vec, num_classes=num_classes,
                matmul_dtype=wd)


# --------------------------------------------------------------------------
# Wrapper
# --------------------------------------------------------------------------
def complex_classifier_forward(x, packed):
    weights = packed["weights"]
    vec = packed["vec"]
    num_classes = packed["num_classes"]
    batch = x.shape[0]

    vmem = pl.BlockSpec(memory_space=pltpu.MemorySpace.VMEM)

    flops = 2 * batch * sum(int(w.shape[0]) * int(w.shape[1]) for w in weights)
    bytes_accessed = (x.size * x.dtype.itemsize
                      + sum(w.size * w.dtype.itemsize for w in weights)
                      + vec.size * vec.dtype.itemsize
                      + batch * OUT_PAD * 4)
    transcendentals = 1728 + batch   # rsqrt per BN feature + per-row LayerNorm

    out = pl.pallas_call(
        _make_kernel(num_classes, packed["matmul_dtype"]),
        out_shape=jax.ShapeDtypeStruct((batch, OUT_PAD), jnp.float32),
        in_specs=[vmem] * (2 + len(weights)),
        out_specs=vmem,
        cost_estimate=pl.CostEstimate(flops=flops,
                                      transcendentals=transcendentals,
                                      bytes_accessed=bytes_accessed),
        compiler_params=pltpu.CompilerParams(vmem_limit_bytes=32 * 1024 * 1024),
    )(x, *weights, vec)
    return out[:, :num_classes]


# --------------------------------------------------------------------------
# Deterministic parameter init (PyTorch-default-style, full raw parameter set)
# --------------------------------------------------------------------------
def _linear_init(key, fan_in, fan_out):
    k_w, k_b = jax.random.split(key)
    bound = 1.0 / (fan_in ** 0.5)
    w = jax.random.uniform(k_w, (fan_in, fan_out), jnp.float32, -bound, bound)
    b = jax.random.uniform(k_b, (1, fan_out), jnp.float32, -bound, bound)
    return w, b


def init_params(input_dim=20, num_classes=2, seed=0):
    key = jax.random.PRNGKey(seed)
    dims = [input_dim, 128, 256, 512, 256, 128, 64, num_classes]
    keys = jax.random.split(key, 9)
    flat = []
    for i in range(6):   # classifier linears followed by BN (gamma=1, beta=0)
        w, b = _linear_init(keys[i], dims[i], dims[i + 1])
        flat += [w, b,
                 jnp.ones((1, dims[i + 1]), jnp.float32),
                 jnp.zeros((1, dims[i + 1]), jnp.float32)]
    w7, b7 = _linear_init(keys[6], dims[6], dims[7])
    flat += [w7, b7]
    rw1, rb1 = _linear_init(keys[7], input_dim, 128)
    flat += [rw1, rb1, jnp.ones((1, 128), jnp.float32), jnp.zeros((1, 128), jnp.float32)]
    rw2, rb2 = _linear_init(keys[8], 256, 256)
    flat += [rw2, rb2, jnp.ones((1, 256), jnp.float32), jnp.zeros((1, 256), jnp.float32)]
    flat += [jnp.ones((1, num_classes), jnp.float32), jnp.zeros((1, num_classes), jnp.float32)]
    return flat


# --------------------------------------------------------------------------
# Pure-JAX reference (original un-optimized math, all biases kept).
# matmul_dtype lets the bf16 kernel path be checked against like-for-like
# matmul precision (f32 accumulation, f32 statistics in both cases).
# --------------------------------------------------------------------------
def reference_forward(x, raw_params, matmul_dtype=jnp.float32):
    (w1, b1, g1, be1, w2, b2, g2, be2, w3, b3, g3, be3, w4, b4, g4, be4,
     w5, b5, g5, be5, w6, b6, g6, be6, w7, b7,
     rw1, rb1, rg1, rbe1, rw2, rb2, rg2, rbe2, lng, lnb) = raw_params

    def dot(a, w):
        return jnp.dot(a.astype(matmul_dtype), w.astype(matmul_dtype),
                       preferred_element_type=jnp.float32)

    relu = lambda v: jnp.maximum(v, 0.0)

    def bnb(h, g, b):
        mu = jnp.mean(h, axis=0, keepdims=True)
        var = jnp.mean((h - mu) ** 2, axis=0, keepdims=True)
        return (h - mu) * jax.lax.rsqrt(var + EPS) * g + b

    def lnorm(h, g, b):
        mu = jnp.mean(h, axis=-1, keepdims=True)
        var = jnp.mean((h - mu) ** 2, axis=-1, keepdims=True)
        return (h - mu) * jax.lax.rsqrt(var + EPS) * g + b

    h = relu(bnb(dot(x, w1) + b1, g1, be1))
    h = h + bnb(dot(x, rw1) + rb1, rg1, rbe1)
    h = relu(bnb(dot(h, w2) + b2, g2, be2))
    h = h + bnb(dot(h, rw2) + rb2, rg2, rbe2)
    h = relu(bnb(dot(h, w3) + b3, g3, be3))
    h = relu(bnb(dot(h, w4) + b4, g4, be4))
    h = relu(bnb(dot(h, w5) + b5, g5, be5))
    h = relu(bnb(dot(h, w6) + b6, g6, be6))
    h = dot(h, w7) + b7
    return lnorm(h, lng, lnb)


if __name__ == "__main__":
    B, INPUT_DIM = 8, 20
    key = jax.random.PRNGKey(0)
    x = jax.random.normal(key, (B, INPUT_DIM), dtype=jnp.float32)

    # ---- check 1: module defaults (num_classes=2), f32 matmul operands -----
    # Validates that the fusion / bias-elimination / folded-BN rewrites are
    # exact up to FP reassociation. LayerNorm over only 2 features amplifies
    # that reassociation, hence the slightly relaxed (but still tight) tol.
    NUM_CLASSES = 2
    raw2 = init_params(input_dim=INPUT_DIM, num_classes=NUM_CLASSES, seed=0)
    packed_f32 = pack_params(raw2, num_classes=NUM_CLASSES,
                             matmul_dtype=jnp.float32)
    out_f32 = complex_classifier_forward(x, packed_f32)
    jax.block_until_ready(out_f32)
    assert out_f32.shape == (B, NUM_CLASSES), out_f32.shape
    ref_f32 = reference_forward(x, raw2)
    err_f32 = float(jnp.max(jnp.abs(out_f32 - ref_f32)))
    assert jnp.allclose(out_f32, ref_f32, rtol=2e-3, atol=2e-3), \
        f"f32 path max abs err = {err_f32}"

    # ---- check 2: default bf16 matmul path, num_classes=16 -----------------
    # Checked against a bf16-matmul reference so the comparison isolates the
    # kernel's rewrites from bf16 rounding; 16 classes keeps the final
    # LayerNorm well conditioned so the tolerance is not LN-amplified.
    raw16 = init_params(input_dim=INPUT_DIM, num_classes=16, seed=1)
    packed_bf16 = pack_params(raw16, num_classes=16)   # bf16 is the default
    out_bf16 = complex_classifier_forward(x, packed_bf16)
    jax.block_until_ready(out_bf16)
    assert out_bf16.shape == (B, 16), out_bf16.shape
    assert bool(jnp.all(jnp.isfinite(out_bf16)))
    ref_bf16 = reference_forward(x, raw16, matmul_dtype=jnp.bfloat16)
    err_bf16 = float(jnp.max(jnp.abs(out_bf16 - ref_bf16)))
    assert jnp.allclose(out_bf16, ref_bf16, rtol=3e-2, atol=3e-2), \
        f"bf16 path max abs err = {err_bf16}"

    print("KERNEL_OK")
</pallas_src>

<mosaic_0001>
module attributes {stable_mosaic.version = 11 : i64} {
  func.func @kernel(%arg0: memref<8x20xf32, #tpu.memory_space<vmem>>, %arg1: memref<20x256xf32, #tpu.memory_space<vmem>>, %arg2: memref<128x256xf32, #tpu.memory_space<vmem>>, %arg3: memref<256x256xf32, #tpu.memory_space<vmem>>, %arg4: memref<256x512xf32, #tpu.memory_space<vmem>>, %arg5: memref<512x256xf32, #tpu.memory_space<vmem>>, %arg6: memref<256x128xf32, #tpu.memory_space<vmem>>, %arg7: memref<128x64xf32, #tpu.memory_space<vmem>>, %arg8: memref<64x128xf32, #tpu.memory_space<vmem>>, %arg9: memref<17x512xf32, #tpu.memory_space<vmem>>, %arg10: memref<8x128xf32, #tpu.memory_space<vmem>>) attributes {dimension_semantics = [], scalar_prefetch = 0 : i64, scratch_operands = 0 : i64, tpu.core_type = #tpu.core_type<tc>} {
    %c0 = arith.constant 0 : index
    %c0_0 = arith.constant 0 : index
    %0 = vector.load %arg0[%c0, %c0_0] : memref<8x20xf32, #tpu.memory_space<vmem>>, vector<8x20xf32>
    %c0_1 = arith.constant 0 : index
    %c0_2 = arith.constant 0 : index
    %1 = vector.load %arg1[%c0_1, %c0_2] : memref<20x256xf32, #tpu.memory_space<vmem>>, vector<20x256xf32>
    %cst = arith.constant dense<0.000000e+00> : vector<8x256xf32>
    %2 = tpu.matmul %0, %1, %cst {dimension_numbers = #tpu.dot_dimension_numbers<[1], [0], [0], [1], [0, 0, 1, 1], [], []>} : vector<8x20xf32>, vector<20x256xf32>, vector<8x256xf32> -> vector<8x256xf32>
    %c0_3 = arith.constant 0 : index
    %c0_4 = arith.constant 0 : index
    %3 = vector.load %arg9[%c0_3, %c0_4] : memref<17x512xf32, #tpu.memory_space<vmem>>, vector<1x256xf32>
    %c1 = arith.constant 1 : index
    %c0_5 = arith.constant 0 : index
    %4 = vector.load %arg9[%c1, %c0_5] : memref<17x512xf32, #tpu.memory_space<vmem>>, vector<1x256xf32>
    %cst_6 = arith.constant dense<0.000000e+00> : vector<256xf32>
    %5 = vector.multi_reduction <add>, %2, %cst_6 [0] : vector<8x256xf32> to vector<256xf32>
    %6 = vector.shape_cast %5 : vector<256xf32> to vector<1x256xf32>
    %cst_7 = arith.constant 1.250000e-01 : f32
    %7 = vector.broadcast %cst_7 : f32 to vector<1x256xf32>
    %8 = arith.mulf %6, %7 : vector<1x256xf32>
    %9 = arith.mulf %2, %2 : vector<8x256xf32>
    %cst_8 = arith.constant dense<0.000000e+00> : vector<256xf32>
    %10 = vector.multi_reduction <add>, %9, %cst_8 [0] : vector<8x256xf32> to vector<256xf32>
    %11 = vector.shape_cast %10 : vector<256xf32> to vector<1x256xf32>
    %cst_9 = arith.constant 1.250000e-01 : f32
    %12 = vector.broadcast %cst_9 : f32 to vector<1x256xf32>
    %13 = arith.mulf %11, %12 : vector<1x256xf32>
    %14 = arith.mulf %8, %8 : vector<1x256xf32>
    %15 = arith.subf %13, %14 : vector<1x256xf32>
    %cst_10 = arith.constant 0.000000e+00 : f32
    %16 = vector.broadcast %cst_10 : f32 to vector<1x256xf32>
    %17 = arith.maximumf %15, %16 : vector<1x256xf32>
    %cst_11 = arith.constant 9.99999974E-6 : f32
    %18 = vector.broadcast %cst_11 : f32 to vector<1x256xf32>
    %19 = arith.addf %17, %18 : vector<1x256xf32>
    %20 = math.rsqrt %19 : vector<1x256xf32>
    %21 = arith.mulf %3, %20 : vector<1x256xf32>
    %22 = vector.broadcast %21 : vector<1x256xf32> to vector<8x256xf32>
    %23 = arith.mulf %2, %22 : vector<8x256xf32>
    %24 = arith.mulf %8, %21 : vector<1x256xf32>
    %25 = arith.subf %4, %24 : vector<1x256xf32>
    %26 = vector.broadcast %25 : vector<1x256xf32> to vector<8x256xf32>
    %27 = arith.addf %23, %26 : vector<8x256xf32>
    %28 = vector.extract_strided_slice %27 {offsets = [0, 0], sizes = [8, 128], strides = [1, 1]} : vector<8x256xf32> to vector<8x128xf32>
    %cst_12 = arith.constant 0.000000e+00 : f32
    %29 = vector.broadcast %cst_12 : f32 to vector<8x128xf32>
    %30 = arith.maximumf %28, %29 : vector<8x128xf32>
    %31 = vector.extract_strided_slice %27 {offsets = [0, 128], sizes = [8, 128], strides = [1, 1]} : vector<8x256xf32> to vector<8x128xf32>
    %32 = arith.addf %30, %31 : vector<8x128xf32>
    %c0_13 = arith.constant 0 : index
    %c0_14 = arith.constant 0 : index
    %33 = vector.load %arg2[%c0_13, %c0_14] : memref<128x256xf32, #tpu.memory_space<vmem>>, vector<128x256xf32>
    %cst_15 = arith.constant dense<0.000000e+00> : vector<8x256xf32>
    %34 = tpu.matmul %32, %33, %cst_15 {dimension_numbers = #tpu.dot_dimension_numbers<[1], [0], [0], [1], [0, 0, 1, 1], [], []>} : vector<8x128xf32>, vector<128x256xf32>, vector<8x256xf32> -> vector<8x256xf32>
    %c2 = arith.constant 2 : index
    %c0_16 = arith.constant 0 : index
    %35 = vector.load %arg9[%c2, %c0_16] : memref<17x512xf32, #tpu.memory_space<vmem>>, vector<1x256xf32>
    %c3 = arith.constant 3 : index
    %c0_17 = arith.constant 0 : index
    %36 = vector.load %arg9[%c3, %c0_17] : memref<17x512xf32, #tpu.memory_space<vmem>>, vector<1x256xf32>
    %cst_18 = arith.constant dense<0.000000e+00> : vector<256xf32>
    %37 = vector.multi_reduction <add>, %34, %cst_18 [0] : vector<8x256xf32> to vector<256xf32>
    %38 = vector.shape_cast %37 : vector<256xf32> to vector<1x256xf32>
    %cst_19 = arith.constant 1.250000e-01 : f32
    %39 = vector.broadcast %cst_19 : f32 to vector<1x256xf32>
    %40 = arith.mulf %38, %39 : vector<1x256xf32>
    %41 = arith.mulf %34, %34 : vector<8x256xf32>
    %cst_20 = arith.constant dense<0.000000e+00> : vector<256xf32>
    %42 = vector.multi_reduction <add>, %41, %cst_20 [0] : vector<8x256xf32> to vector<256xf32>
    %43 = vector.shape_cast %42 : vector<256xf32> to vector<1x256xf32>
    %cst_21 = arith.constant 1.250000e-01 : f32
    %44 = vector.broadcast %cst_21 : f32 to vector<1x256xf32>
    %45 = arith.mulf %43, %44 : vector<1x256xf32>
    %46 = arith.mulf %40, %40 : vector<1x256xf32>
    %47 = arith.subf %45, %46 : vector<1x256xf32>
    %cst_22 = arith.constant 0.000000e+00 : f32
    %48 = vector.broadcast %cst_22 : f32 to vector<1x256xf32>
    %49 = arith.maximumf %47, %48 : vector<1x256xf32>
    %cst_23 = arith.constant 9.99999974E-6 : f32
    %50 = vector.broadcast %cst_23 : f32 to vector<1x256xf32>
    %51 = arith.addf %49, %50 : vector<1x256xf32>
    %52 = math.rsqrt %51 : vector<1x256xf32>
    %53 = arith.mulf %35, %52 : vector<1x256xf32>
    %54 = vector.broadcast %53 : vector<1x256xf32> to vector<8x256xf32>
    %55 = arith.mulf %34, %54 : vector<8x256xf32>
    %56 = arith.mulf %40, %53 : vector<1x256xf32>
    %57 = arith.subf %36, %56 : vector<1x256xf32>
    %58 = vector.broadcast %57 : vector<1x256xf32> to vector<8x256xf32>
    %59 = arith.addf %55, %58 : vector<8x256xf32>
    %cst_24 = arith.constant 0.000000e+00 : f32
    %60 = vector.broadcast %cst_24 : f32 to vector<8x256xf32>
    %61 = arith.maximumf %59, %60 : vector<8x256xf32>
    %c0_25 = arith.constant 0 : index
    %c0_26 = arith.constant 0 : index
    %62 = vector.load %arg3[%c0_25, %c0_26] : memref<256x256xf32, #tpu.memory_space<vmem>>, vector<256x256xf32>
    %cst_27 = arith.constant dense<0.000000e+00> : vector<8x256xf32>
    %63 = tpu.matmul %61, %62, %cst_27 {dimension_numbers = #tpu.dot_dimension_numbers<[1], [0], [0], [1], [0, 0, 1, 1], [], []>} : vector<8x256xf32>, vector<256x256xf32>, vector<8x256xf32> -> vector<8x256xf32>
    %c4 = arith.constant 4 : index
    %c0_28 = arith.constant 0 : index
    %64 = vector.load %arg9[%c4, %c0_28] : memref<17x512xf32, #tpu.memory_space<vmem>>, vector<1x256xf32>
    %c5 = arith.constant 5 : index
    %c0_29 = arith.constant 0 : index
    %65 = vector.load %arg9[%c5, %c0_29] : memref<17x512xf32, #tpu.memory_space<vmem>>, vector<1x256xf32>
    %cst_30 = arith.constant dense<0.000000e+00> : vector<256xf32>
    %66 = vector.multi_reduction <add>, %63, %cst_30 [0] : vector<8x256xf32> to vector<256xf32>
    %67 = vector.shape_cast %66 : vector<256xf32> to vector<1x256xf32>
    %cst_31 = arith.constant 1.250000e-01 : f32
    %68 = vector.broadcast %cst_31 : f32 to vector<1x256xf32>
    %69 = arith.mulf %67, %68 : vector<1x256xf32>
    %70 = arith.mulf %63, %63 : vector<8x256xf32>
    %cst_32 = arith.constant dense<0.000000e+00> : vector<256xf32>
    %71 = vector.multi_reduction <add>, %70, %cst_32 [0] : vector<8x256xf32> to vector<256xf32>
    %72 = vector.shape_cast %71 : vector<256xf32> to vector<1x256xf32>
    %cst_33 = arith.constant 1.250000e-01 : f32
    %73 = vector.broadcast %cst_33 : f32 to vector<1x256xf32>
    %74 = arith.mulf %72, %73 : vector<1x256xf32>
    %75 = arith.mulf %69, %69 : vector<1x256xf32>
    %76 = arith.subf %74, %75 : vector<1x256xf32>
    %cst_34 = arith.constant 0.000000e+00 : f32
    %77 = vector.broadcast %cst_34 : f32 to vector<1x256xf32>
    %78 = arith.maximumf %76, %77 : vector<1x256xf32>
    %cst_35 = arith.constant 9.99999974E-6 : f32
    %79 = vector.broadcast %cst_35 : f32 to vector<1x256xf32>
    %80 = arith.addf %78, %79 : vector<1x256xf32>
    %81 = math.rsqrt %80 : vector<1x256xf32>
    %82 = arith.mulf %64, %81 : vector<1x256xf32>
    %83 = vector.broadcast %82 : vector<1x256xf32> to vector<8x256xf32>
    %84 = arith.mulf %63, %83 : vector<8x256xf32>
    %85 = arith.mulf %69, %82 : vector<1x256xf32>
    %86 = arith.subf %65, %85 : vector<1x256xf32>
    %87 = vector.broadcast %86 : vector<1x256xf32> to vector<8x256xf32>
    %88 = arith.addf %84, %87 : vector<8x256xf32>
    %89 = arith.addf %61, %88 : vector<8x256xf32>
    %c0_36 = arith.constant 0 : index
    %c0_37 = arith.constant 0 : index
    %90 = vector.load %arg4[%c0_36, %c0_37] : memref<256x512xf32, #tpu.memory_space<vmem>>, vector<256x512xf32>
    %cst_38 = arith.constant dense<0.000000e+00> : vector<8x512xf32>
    %91 = tpu.matmul %89, %90, %cst_38 {dimension_numbers = #tpu.dot_dimension_numbers<[1], [0], [0], [1], [0, 0, 1, 1], [], []>} : vector<8x256xf32>, vector<256x512xf32>, vector<8x512xf32> -> vector<8x512xf32>
    %c6 = arith.constant 6 : index
    %c0_39 = arith.constant 0 : index
    %92 = vector.load %arg9[%c6, %c0_39] : memref<17x512xf32, #tpu.memory_space<vmem>>, vector<1x512xf32>
    %c7 = arith.constant 7 : index
    %c0_40 = arith.constant 0 : index
    %93 = vector.load %arg9[%c7, %c0_40] : memref<17x512xf32, #tpu.memory_space<vmem>>, vector<1x512xf32>
    %cst_41 = arith.constant dense<0.000000e+00> : vector<512xf32>
    %94 = vector.multi_reduction <add>, %91, %cst_41 [0] : vector<8x512xf32> to vector<512xf32>
    %95 = vector.shape_cast %94 : vector<512xf32> to vector<1x512xf32>
    %cst_42 = arith.constant 1.250000e-01 : f32
    %96 = vector.broadcast %cst_42 : f32 to vector<1x512xf32>
    %97 = arith.mulf %95, %96 : vector<1x512xf32>
    %98 = arith.mulf %91, %91 : vector<8x512xf32>
    %cst_43 = arith.constant dense<0.000000e+00> : vector<512xf32>
    %99 = vector.multi_reduction <add>, %98, %cst_43 [0] : vector<8x512xf32> to vector<512xf32>
    %100 = vector.shape_cast %99 : vector<512xf32> to vector<1x512xf32>
    %cst_44 = arith.constant 1.250000e-01 : f32
    %101 = vector.broadcast %cst_44 : f32 to vector<1x512xf32>
    %102 = arith.mulf %100, %101 : vector<1x512xf32>
    %103 = arith.mulf %97, %97 : vector<1x512xf32>
    %104 = arith.subf %102, %103 : vector<1x512xf32>
    %cst_45 = arith.constant 0.000000e+00 : f32
    %105 = vector.broadcast %cst_45 : f32 to vector<1x512xf32>
    %106 = arith.maximumf %104, %105 : vector<1x512xf32>
    %cst_46 = arith.constant 9.99999974E-6 : f32
    %107 = vector.broadcast %cst_46 : f32 to vector<1x512xf32>
    %108 = arith.addf %106, %107 : vector<1x512xf32>
    %109 = math.rsqrt %108 : vector<1x512xf32>
    %110 = arith.mulf %92, %109 : vector<1x512xf32>
    %111 = vector.broadcast %110 : vector<1x512xf32> to vector<8x512xf32>
    %112 = arith.mulf %91, %111 : vector<8x512xf32>
    %113 = arith.mulf %97, %110 : vector<1x512xf32>
    %114 = arith.subf %93, %113 : vector<1x512xf32>
    %115 = vector.broadcast %114 : vector<1x512xf32> to vector<8x512xf32>
    %116 = arith.addf %112, %115 : vector<8x512xf32>
    %cst_47 = arith.constant 0.000000e+00 : f32
    %117 = vector.broadcast %cst_47 : f32 to vector<8x512xf32>
    %118 = arith.maximumf %116, %117 : vector<8x512xf32>
    %c0_48 = arith.constant 0 : index
    %c0_49 = arith.constant 0 : index
    %119 = vector.load %arg5[%c0_48, %c0_49] : memref<512x256xf32, #tpu.memory_space<vmem>>, vector<512x256xf32>
    %cst_50 = arith.constant dense<0.000000e+00> : vector<8x256xf32>
    %120 = tpu.matmul %118, %119, %cst_50 {dimension_numbers = #tpu.dot_dimension_numbers<[1], [0], [0], [1], [0, 0, 1, 1], [], []>} : vector<8x512xf32>, vector<512x256xf32>, vector<8x256xf32> -> vector<8x256xf32>
    %c8 = arith.constant 8 : index
    %c0_51 = arith.constant 0 : index
    %121 = vector.load %arg9[%c8, %c0_51] : memref<17x512xf32, #tpu.memory_space<vmem>>, vector<1x256xf32>
    %c9 = arith.constant 9 : index
    %c0_52 = arith.constant 0 : index
    %122 = vector.load %arg9[%c9, %c0_52] : memref<17x512xf32, #tpu.memory_space<vmem>>, vector<1x256xf32>
    %cst_53 = arith.constant dense<0.000000e+00> : vector<256xf32>
    %123 = vector.multi_reduction <add>, %120, %cst_53 [0] : vector<8x256xf32> to vector<256xf32>
    %124 = vector.shape_cast %123 : vector<256xf32> to vector<1x256xf32>
    %cst_54 = arith.constant 1.250000e-01 : f32
    %125 = vector.broadcast %cst_54 : f32 to vector<1x256xf32>
    %126 = arith.mulf %124, %125 : vector<1x256xf32>
    %127 = arith.mulf %120, %120 : vector<8x256xf32>
    %cst_55 = arith.constant dense<0.000000e+00> : vector<256xf32>
    %128 = vector.multi_reduction <add>, %127, %cst_55 [0] : vector<8x256xf32> to vector<256xf32>
    %129 = vector.shape_cast %128 : vector<256xf32> to vector<1x256xf32>
    %cst_56 = arith.constant 1.250000e-01 : f32
    %130 = vector.broadcast %cst_56 : f32 to vector<1x256xf32>
    %131 = arith.mulf %129, %130 : vector<1x256xf32>
    %132 = arith.mulf %126, %126 : vector<1x256xf32>
    %133 = arith.subf %131, %132 : vector<1x256xf32>
    %cst_57 = arith.constant 0.000000e+00 : f32
    %134 = vector.broadcast %cst_57 : f32 to vector<1x256xf32>
    %135 = arith.maximumf %133, %134 : vector<1x256xf32>
    %cst_58 = arith.constant 9.99999974E-6 : f32
    %136 = vector.broadcast %cst_58 : f32 to vector<1x256xf32>
    %137 = arith.addf %135, %136 : vector<1x256xf32>
    %138 = math.rsqrt %137 : vector<1x256xf32>
    %139 = arith.mulf %121, %138 : vector<1x256xf32>
    %140 = vector.broadcast %139 : vector<1x256xf32> to vector<8x256xf32>
    %141 = arith.mulf %120, %140 : vector<8x256xf32>
    %142 = arith.mulf %126, %139 : vector<1x256xf32>
    %143 = arith.subf %122, %142 : vector<1x256xf32>
    %144 = vector.broadcast %143 : vector<1x256xf32> to vector<8x256xf32>
    %145 = arith.addf %141, %144 : vector<8x256xf32>
    %cst_59 = arith.constant 0.000000e+00 : f32
    %146 = vector.broadcast %cst_59 : f32 to vector<8x256xf32>
    %147 = arith.maximumf %145, %146 : vector<8x256xf32>
    %c0_60 = arith.constant 0 : index
    %c0_61 = arith.constant 0 : index
    %148 = vector.load %arg6[%c0_60, %c0_61] : memref<256x128xf32, #tpu.memory_space<vmem>>, vector<256x128xf32>
    %cst_62 = arith.constant dense<0.000000e+00> : vector<8x128xf32>
    %149 = tpu.matmul %147, %148, %cst_62 {dimension_numbers = #tpu.dot_dimension_numbers<[1], [0], [0], [1], [0, 0, 1, 1], [], []>} : vector<8x256xf32>, vector<256x128xf32>, vector<8x128xf32> -> vector<8x128xf32>
    %c10 = arith.constant 10 : index
    %c0_63 = arith.constant 0 : index
    %150 = vector.load %arg9[%c10, %c0_63] : memref<17x512xf32, #tpu.memory_space<vmem>>, vector<1x128xf32>
    %c11 = arith.constant 11 : index
    %c0_64 = arith.constant 0 : index
    %151 = vector.load %arg9[%c11, %c0_64] : memref<17x512xf32, #tpu.memory_space<vmem>>, vector<1x128xf32>
    %cst_65 = arith.constant dense<0.000000e+00> : vector<128xf32>
    %152 = vector.multi_reduction <add>, %149, %cst_65 [0] : vector<8x128xf32> to vector<128xf32>
    %153 = vector.shape_cast %152 : vector<128xf32> to vector<1x128xf32>
    %cst_66 = arith.constant 1.250000e-01 : f32
    %154 = vector.broadcast %cst_66 : f32 to vector<1x128xf32>
    %155 = arith.mulf %153, %154 : vector<1x128xf32>
    %156 = arith.mulf %149, %149 : vector<8x128xf32>
    %cst_67 = arith.constant dense<0.000000e+00> : vector<128xf32>
    %157 = vector.multi_reduction <add>, %156, %cst_67 [0] : vector<8x128xf32> to vector<128xf32>
    %158 = vector.shape_cast %157 : vector<128xf32> to vector<1x128xf32>
    %cst_68 = arith.constant 1.250000e-01 : f32
    %159 = vector.broadcast %cst_68 : f32 to vector<1x128xf32>
    %160 = arith.mulf %158, %159 : vector<1x128xf32>
    %161 = arith.mulf %155, %155 : vector<1x128xf32>
    %162 = arith.subf %160, %161 : vector<1x128xf32>
    %cst_69 = arith.constant 0.000000e+00 : f32
    %163 = vector.broadcast %cst_69 : f32 to vector<1x128xf32>
    %164 = arith.maximumf %162, %163 : vector<1x128xf32>
    %cst_70 = arith.constant 9.99999974E-6 : f32
    %165 = vector.broadcast %cst_70 : f32 to vector<1x128xf32>
    %166 = arith.addf %164, %165 : vector<1x128xf32>
    %167 = math.rsqrt %166 : vector<1x128xf32>
    %168 = arith.mulf %150, %167 : vector<1x128xf32>
    %169 = vector.broadcast %168 : vector<1x128xf32> to vector<8x128xf32>
    %170 = arith.mulf %149, %169 : vector<8x128xf32>
    %171 = arith.mulf %155, %168 : vector<1x128xf32>
    %172 = arith.subf %151, %171 : vector<1x128xf32>
    %173 = vector.broadcast %172 : vector<1x128xf32> to vector<8x128xf32>
    %174 = arith.addf %170, %173 : vector<8x128xf32>
    %cst_71 = arith.constant 0.000000e+00 : f32
    %175 = vector.broadcast %cst_71 : f32 to vector<8x128xf32>
    %176 = arith.maximumf %174, %175 : vector<8x128xf32>
    %c0_72 = arith.constant 0 : index
    %c0_73 = arith.constant 0 : index
    %177 = vector.load %arg7[%c0_72, %c0_73] : memref<128x64xf32, #tpu.memory_space<vmem>>, vector<128x64xf32>
    %cst_74 = arith.constant dense<0.000000e+00> : vector<8x64xf32>
    %178 = tpu.matmul %176, %177, %cst_74 {dimension_numbers = #tpu.dot_dimension_numbers<[1], [0], [0], [1], [0, 0, 1, 1], [], []>} : vector<8x128xf32>, vector<128x64xf32>, vector<8x64xf32> -> vector<8x64xf32>
    %c12 = arith.constant 12 : index
    %c0_75 = arith.constant 0 : index
    %179 = vector.load %arg9[%c12, %c0_75] : memref<17x512xf32, #tpu.memory_space<vmem>>, vector<1x64xf32>
    %c13 = arith.constant 13 : index
    %c0_76 = arith.constant 0 : index
    %180 = vector.load %arg9[%c13, %c0_76] : memref<17x512xf32, #tpu.memory_space<vmem>>, vector<1x64xf32>
    %cst_77 = arith.constant dense<0.000000e+00> : vector<64xf32>
    %181 = vector.multi_reduction <add>, %178, %cst_77 [0] : vector<8x64xf32> to vector<64xf32>
    %182 = vector.shape_cast %181 : vector<64xf32> to vector<1x64xf32>
    %cst_78 = arith.constant 1.250000e-01 : f32
    %183 = vector.broadcast %cst_78 : f32 to vector<1x64xf32>
    %184 = arith.mulf %182, %183 : vector<1x64xf32>
    %185 = arith.mulf %178, %178 : vector<8x64xf32>
    %cst_79 = arith.constant dense<0.000000e+00> : vector<64xf32>
    %186 = vector.multi_reduction <add>, %185, %cst_79 [0] : vector<8x64xf32> to vector<64xf32>
    %187 = vector.shape_cast %186 : vector<64xf32> to vector<1x64xf32>
    %cst_80 = arith.constant 1.250000e-01 : f32
    %188 = vector.broadcast %cst_80 : f32 to vector<1x64xf32>
    %189 = arith.mulf %187, %188 : vector<1x64xf32>
    %190 = arith.mulf %184, %184 : vector<1x64xf32>
    %191 = arith.subf %189, %190 : vector<1x64xf32>
    %cst_81 = arith.constant 0.000000e+00 : f32
    %192 = vector.broadcast %cst_81 : f32 to vector<1x64xf32>
    %193 = arith.maximumf %191, %192 : vector<1x64xf32>
    %cst_82 = arith.constant 9.99999974E-6 : f32
    %194 = vector.broadcast %cst_82 : f32 to vector<1x64xf32>
    %195 = arith.addf %193, %194 : vector<1x64xf32>
    %196 = math.rsqrt %195 : vector<1x64xf32>
    %197 = arith.mulf %179, %196 : vector<1x64xf32>
    %198 = vector.broadcast %197 : vector<1x64xf32> to vector<8x64xf32>
    %199 = arith.mulf %178, %198 : vector<8x64xf32>
    %200 = arith.mulf %184, %197 : vector<1x64xf32>
    %201 = arith.subf %180, %200 : vector<1x64xf32>
    %202 = vector.broadcast %201 : vector<1x64xf32> to vector<8x64xf32>
    %203 = arith.addf %199, %202 : vector<8x64xf32>
    %cst_83 = arith.constant 0.000000e+00 : f32
    %204 = vector.broadcast %cst_83 : f32 to vector<8x64xf32>
    %205 = arith.maximumf %203, %204 : vector<8x64xf32>
    %c0_84 = arith.constant 0 : index
    %c0_85 = arith.constant 0 : index
    %206 = vector.load %arg8[%c0_84, %c0_85] : memref<64x128xf32, #tpu.memory_space<vmem>>, vector<64x128xf32>
    %cst_86 = arith.constant dense<0.000000e+00> : vector<8x128xf32>
    %207 = tpu.matmul %205, %206, %cst_86 {dimension_numbers = #tpu.dot_dimension_numbers<[1], [0], [0], [1], [0, 0, 1, 1], [], []>} : vector<8x64xf32>, vector<64x128xf32>, vector<8x128xf32> -> vector<8x128xf32>
    %c14 = arith.constant 14 : index
    %c0_87 = arith.constant 0 : index
    %208 = vector.load %arg9[%c14, %c0_87] : memref<17x512xf32, #tpu.memory_space<vmem>>, vector<1x128xf32>
    %209 = vector.broadcast %208 : vector<1x128xf32> to vector<8x128xf32>
    %210 = arith.addf %207, %209 : vector<8x128xf32>
    %211 = tpu.iota {dimensions = array<i32: 1>} : vector<1x128xi32>
    %c2_i32 = arith.constant 2 : i32
    %212 = vector.broadcast %c2_i32 : i32 to vector<1x128xi32>
    %213 = arith.cmpi slt, %211, %212 : vector<1x128xi32>
    %214 = arith.extui %213 : vector<1x128xi1> to vector<1x128xi32>
    %215 = arith.sitofp %214 : vector<1x128xi32> to vector<1x128xf32>
    %cst_88 = arith.constant dense<0.000000e+00> : vector<8xf32>
    %216 = vector.multi_reduction <add>, %210, %cst_88 [1] : vector<8x128xf32> to vector<8xf32>
    %217 = vector.shape_cast %216 : vector<8xf32> to vector<8x1xf32>
    %cst_89 = arith.constant 5.000000e-01 : f32
    %218 = vector.broadcast %cst_89 : f32 to vector<8x1xf32>
    %219 = arith.mulf %217, %218 : vector<8x1xf32>
    %220 = vector.broadcast %219 : vector<8x1xf32> to vector<8x128xf32>
    %221 = arith.subf %210, %220 : vector<8x128xf32>
    %222 = arith.mulf %221, %221 : vector<8x128xf32>
    %223 = vector.broadcast %215 : vector<1x128xf32> to vector<8x128xf32>
    %224 = arith.mulf %222, %223 : vector<8x128xf32>
    %cst_90 = arith.constant dense<0.000000e+00> : vector<8xf32>
    %225 = vector.multi_reduction <add>, %224, %cst_90 [1] : vector<8x128xf32> to vector<8xf32>
    %226 = vector.shape_cast %225 : vector<8xf32> to vector<8x1xf32>
    %cst_91 = arith.constant 5.000000e-01 : f32
    %227 = vector.broadcast %cst_91 : f32 to vector<8x1xf32>
    %228 = arith.mulf %226, %227 : vector<8x1xf32>
    %cst_92 = arith.constant 9.99999974E-6 : f32
    %229 = vector.broadcast %cst_92 : f32 to vector<8x1xf32>
    %230 = arith.addf %228, %229 : vector<8x1xf32>
    %231 = math.rsqrt %230 : vector<8x1xf32>
    %232 = vector.broadcast %231 : vector<8x1xf32> to vector<8x128xf32>
    %233 = arith.mulf %221, %232 : vector<8x128xf32>
    %c15 = arith.constant 15 : index
    %c0_93 = arith.constant 0 : index
    %234 = vector.load %arg9[%c15, %c0_93] : memref<17x512xf32, #tpu.memory_space<vmem>>, vector<1x128xf32>
    %235 = vector.broadcast %234 : vector<1x128xf32> to vector<8x128xf32>
    %236 = arith.mulf %233, %235 : vector<8x128xf32>
    %c16 = arith.constant 16 : index
    %c0_94 = arith.constant 0 : index
    %237 = vector.load %arg9[%c16, %c0_94] : memref<17x512xf32, #tpu.memory_space<vmem>>, vector<1x128xf32>
    %238 = vector.broadcast %237 : vector<1x128xf32> to vector<8x128xf32>
    %239 = arith.addf %236, %238 : vector<8x128xf32>
    %c0_95 = arith.constant 0 : index
    %c0_96 = arith.constant 0 : index
    %240 = vector.load %arg10[%c0_95, %c0_96] : memref<8x128xf32, #tpu.memory_space<vmem>>, vector<8x128xf32>
    tpu.vector_store %arg10[%c0_95, %c0_96], %239 {strides = array<i32>} : memref<8x128xf32, #tpu.memory_space<vmem>>, vector<8x128xf32>,
    return
  }
}

</mosaic_0001>

<llo_original>
// kernel: tpu_custom_call.1
$region0: #{tpu_custom_call.1}
  #allocation0 [shape = 'u32[]', space=smem, size = 0x4, offset = 0x4, fixed_abs, tag = 'smem constant byte address 0x4 - core index']
  #allocation1 [shape = 'u32[144,128]{1,0:T(1,128)}', space=vmem, size = 0x12000, scoped, tag = 'internal scratch']
  %s0 = inlined_call_operand.vmem [shape: f32[8,20], index: 0, kind: input, shape index: {}]
  %s1 = inlined_call_operand.hbm [shape: f32[20,256], index: 1, kind: input, shape index: {}]
  %s2 = inlined_call_operand.hbm [shape: f32[128,256], index: 2, kind: input, shape index: {}]
  %s3 = inlined_call_operand.hbm [shape: f32[256,256], index: 3, kind: input, shape index: {}]
  %s4 = inlined_call_operand.hbm [shape: f32[256,512], index: 4, kind: input, shape index: {}]
  %s5 = inlined_call_operand.hbm [shape: f32[512,256], index: 5, kind: input, shape index: {}]
  %s6 = inlined_call_operand.hbm [shape: f32[256,128], index: 6, kind: input, shape index: {}]
  %s7 = inlined_call_operand.vmem [shape: f32[128,64], index: 7, kind: input, shape index: {}]
  %s8 = inlined_call_operand.vmem [shape: f32[64,128], index: 8, kind: input, shape index: {}]
  %s9 = inlined_call_operand.vmem [shape: f32[17,512], index: 9, kind: input, shape index: {}]
  %s10 = inlined_call_operand.hbm [shape: f32[8,128], index: 10, kind: output, shape index: {}]
  %s11 = sld [smem:[#allocation0]]
  $region74: #{tpu_custom_call.1} parent=0
    _
  %s13 = ssub.s32 1, %s11
  %s14 = scalar_select 0, %s13, %s11
  $region1: #{tpu_custom_call.1} parent=0
    #allocation2 [shape = 'u8[24576]{0}', space=vmem, size = 0x6000, scoped, tag = 'input window, operand 1, single buffered']
    #allocation3 [shape = 's32[1]{0}', space=sflag, size = 0x4, scoped, tag = 'scoped memory for tpu_custom_call.1']
    #allocation4 [shape = 's32[1]{0}', space=sflag, size = 0x4, scoped, tag = 'scoped memory for tpu_custom_call.1']
    #allocation5 [shape = 'u8[131072]{0}', space=vmem, size = 0x20000, scoped, tag = 'input window, operand 2, single buffered']
    #allocation6 [shape = 's32[1]{0}', space=sflag, size = 0x4, scoped, tag = 'scoped memory for tpu_custom_call.1']
    #allocation7 [shape = 'u8[262144]{0}', space=vmem, size = 0x40000, scoped, tag = 'input window, operand 3, single buffered']
    #allocation8 [shape = 'u8[524288]{0}', space=vmem, size = 0x80000, scoped, tag = 'input window, operand 4, single buffered']
    #allocation9 [shape = 's32[1]{0}', space=sflag, size = 0x4, scoped, tag = 'scoped memory for tpu_custom_call.1']
    #allocation10 [shape = 'u8[524288]{0}', space=vmem, size = 0x80000, scoped, tag = 'input window, operand 5, single buffered']
    #allocation11 [shape = 'u8[131072]{0}', space=vmem, size = 0x20000, scoped, tag = 'input window, operand 6, single buffered']
    #allocation12 [shape = 's32[1]{0}', space=sflag, size = 0x4, scoped, tag = 'scoped memory for tpu_custom_call.1']
    #allocation13 [shape = 'u8[4096]{0}', space=vmem, size = 0x1000, scoped, tag = 'output window, operand 0, single buffered']
    %15 = vsyncpa [#allocation3], 0
    %16 = vsyncpa [#allocation6], 0
    %17 = vsyncpa [#allocation9], 0
    %18 = vsyncpa [#allocation12], 0
    %19 = vsyncpa [#allocation4], 0
    // Predicated region
    $region2: #{tpu_custom_call.1} parent=1 // pred_check
      _
    $region3: #{tpu_custom_call.1} parent=1 // pred_check_branch
      %21 = sbr.rel (0) target = $region5
    $region4: #{tpu_custom_call.1} parent=1 // pred_region
      _
    $region5: #{tpu_custom_call.1} parent=1 // pred_fallthru
      _
    // Predicated region
    $region6: #{tpu_custom_call.1} parent=1 // pred_check
      _
    $region7: #{tpu_custom_call.1} parent=1 // pred_check_branch
      %23 = sbr.rel (0) target = $region9
    $region8: #{tpu_custom_call.1} parent=1 // pred_region
      %s25 = ssub.s32 768, 768
      %26 = vsyncadd [#allocation3], %s25
      %s27 = sshll.u32 [#allocation2], 4
      %s28 = int_to_ptr.vmem [resolvable:$true] %s27
      %33 = dma.hbm_to_vmem [thread:$0]  %s1, 768, %s28, [#allocation3], 256, 256, 16
    $region9: #{tpu_custom_call.1} parent=1 // pred_fallthru
      _
    // Predicated region
    $region10: #{tpu_custom_call.1} parent=1 // pred_check
      _
    $region11: #{tpu_custom_call.1} parent=1 // pred_check_branch
      %35 = sbr.rel (0) target = $region13
    $region12: #{tpu_custom_call.1} parent=1 // pred_region
      %s37 = ssub.s32 4096, 4096
      %38 = vsyncadd [#allocation6], %s37
      %s39 = sshll.u32 [#allocation5], 4
      %s40 = int_to_ptr.vmem [resolvable:$true] %s39
      %45 = dma.hbm_to_vmem [thread:$0]  %s2, 4096, %s40, [#allocation6], 256, 256, 16
    $region13: #{tpu_custom_call.1} parent=1 // pred_fallthru
      _
    // Predicated region
    $region14: #{tpu_custom_call.1} parent=1 // pred_check
      _
    $region15: #{tpu_custom_call.1} parent=1 // pred_check_branch
      %47 = sbr.rel (0) target = $region17
    $region16: #{tpu_custom_call.1} parent=1 // pred_region
      %s49 = ssub.s32 8192, 8192
      %50 = vsyncadd [#allocation6], %s49
      %s51 = sshll.u32 [#allocation7], 4
      %s52 = int_to_ptr.vmem [resolvable:$true] %s51
      %57 = dma.hbm_to_vmem [thread:$0]  %s3, 8192, %s52, [#allocation6], 256, 256, 16
    $region17: #{tpu_custom_call.1} parent=1 // pred_fallthru
      _
    // Predicated region
    $region18: #{tpu_custom_call.1} parent=1 // pred_check
      _
    $region19: #{tpu_custom_call.1} parent=1 // pred_check_branch
      %59 = sbr.rel (0) target = $region21
    $region20: #{tpu_custom_call.1} parent=1 // pred_region
      %s61 = ssub.s32 16384, 16384
      %62 = vsyncadd [#allocation9], %s61
      %s63 = sshll.u32 [#allocation8], 4
      %s64 = int_to_ptr.vmem [resolvable:$true] %s63
      %69 = dma.hbm_to_vmem [thread:$0]  %s4, 16384, %s64, [#allocation9], 512, 512, 32
    $region21: #{tpu_custom_call.1} parent=1 // pred_fallthru
      _
    // Predicated region
    $region22: #{tpu_custom_call.1} parent=1 // pred_check
      _
    $region23: #{tpu_custom_call.1} parent=1 // pred_check_branch
      %71 = sbr.rel (0) target = $region25
    $region24: #{tpu_custom_call.1} parent=1 // pred_region
      %s73 = ssub.s32 16384, 16384
      %74 = vsyncadd [#allocation9], %s73
      %s75 = sshll.u32 [#allocation10], 4
      %s76 = int_to_ptr.vmem [resolvable:$true] %s75
      %81 = dma.hbm_to_vmem [thread:$0]  %s5, 16384, %s76, [#allocation9], 256, 256, 16
    $region25: #{tpu_custom_call.1} parent=1 // pred_fallthru
      _
    // Predicated region
    $region26: #{tpu_custom_call.1} parent=1 // pred_check
      _
    $region27: #{tpu_custom_call.1} parent=1 // pred_check_branch
      %83 = sbr.rel (0) target = $region29
    $region28: #{tpu_custom_call.1} parent=1 // pred_region
      %s85 = ssub.s32 4096, 4096
      %86 = vsyncadd [#allocation12], %s85
      %s87 = sshll.u32 [#allocation11], 4
      %s88 = int_to_ptr.vmem [resolvable:$true] %s87
      %93 = dma.hbm_to_vmem [thread:$0]  %s6, 4096, %s88, [#allocation12], 128, 128, 8
    $region29: #{tpu_custom_call.1} parent=1 // pred_fallthru
      _
    // Predicated region
    $region30: #{tpu_custom_call.1} parent=1 // pred_check
      _
    $region31: #{tpu_custom_call.1} parent=1 // pred_check_branch
      %95 = sbr.rel (0) target = $region33
    $region32: #{tpu_custom_call.1} parent=1 // pred_region
      _
    $region33: #{tpu_custom_call.1} parent=1 // pred_fallthru
      _
    // Predicated region
    $region34: #{tpu_custom_call.1} parent=1 // pred_check
      _
    $region35: #{tpu_custom_call.1} parent=1 // pred_check_branch
      %97 = sbr.rel (0) target = $region37
    $region36: #{tpu_custom_call.1} parent=1 // pred_region
      _
    $region37: #{tpu_custom_call.1} parent=1 // pred_fallthru
      _
    // Predicated region
    $region38: #{tpu_custom_call.1} parent=1 // pred_check
      _
    $region39: #{tpu_custom_call.1} parent=1 // pred_check_branch
      %99 = sbr.rel (0) target = $region41
    $region40: #{tpu_custom_call.1} parent=1 // pred_region
      _
    $region41: #{tpu_custom_call.1} parent=1 // pred_fallthru
      _
    // Predicated region
    $region42: #{tpu_custom_call.1} parent=1 // pred_check
      _
    $region43: #{tpu_custom_call.1} parent=1 // pred_check_branch
      %101 = sbr.rel (0) target = $region45
    $region44: #{tpu_custom_call.1} parent=1 // pred_region
      %102 = dma.done [#allocation3], 768
    $region45: #{tpu_custom_call.1} parent=1 // pred_fallthru
      _
    // Predicated region
    $region46: #{tpu_custom_call.1} parent=1 // pred_check
      _
    $region47: #{tpu_custom_call.1} parent=1 // pred_check_branch
      %104 = sbr.rel (0) target = $region49
    $region48: #{tpu_custom_call.1} parent=1 // pred_region
      %105 = dma.done [#allocation6], 4096
    $region49: #{tpu_custom_call.1} parent=1 // pred_fallthru
      _
    // Predicated region
    $region50: #{tpu_custom_call.1} parent=1 // pred_check
      _
    $region51: #{tpu_custom_call.1} parent=1 // pred_check_branch
      %107 = sbr.rel (0) target = $region53
    $region52: #{tpu_custom_call.1} parent=1 // pred_region
      %108 = dma.done [#allocation6], 8192
    $region53: #{tpu_custom_call.1} parent=1 // pred_fallthru
      _
    // Predicated region
    $region54: #{tpu_custom_call.1} parent=1 // pred_check
      _
    $region55: #{tpu_custom_call.1} parent=1 // pred_check_branch
      %110 = sbr.rel (0) target = $region57
    $region56: #{tpu_custom_call.1} parent=1 // pred_region
      %111 = dma.done [#allocation9], 16384
    $region57: #{tpu_custom_call.1} parent=1 // pred_fallthru
      _
    // Predicated region
    $region58: #{tpu_custom_call.1} parent=1 // pred_check
      _
    $region59: #{tpu_custom_call.1} parent=1 // pred_check_branch
      %113 = sbr.rel (0) target = $region61
    $region60: #{tpu_custom_call.1} parent=1 // pred_region
      %114 = dma.done [#allocation9], 16384
    $region61: #{tpu_custom_call.1} parent=1 // pred_fallthru
      _
    // Predicated region
    $region62: #{tpu_custom_call.1} parent=1 // pred_check
      _
    $region63: #{tpu_custom_call.1} parent=1 // pred_check_branch
      %116 = sbr.rel (0) target = $region65
    $region64: #{tpu_custom_call.1} parent=1 // pred_region
      %117 = dma.done [#allocation12], 4096
    $region65: #{tpu_custom_call.1} parent=1 // pred_fallthru
      _
    %v118 = vld [vmem:[%s0] sm:$0xff]
    %v119 = vld [vmem:[#allocation2] sm:$0xff]
    %v120 = vld [vmem:[#allocation2 + $0x8] sm:$0xff]
    %v121 = vld [vmem:[#allocation2 + $0x10] sm:$0xff]
    %v122 = vld [vmem:[#allocation2 + $0x18] sm:$0xff]
    %v123 = vld [vmem:[#allocation2 + $0x20] sm:$0xf]
    %v124 = vld [vmem:[#allocation2 + $0x28] sm:$0xf]
    %vm125 = vcmask 162816
    %v127 = vsel %vm125, %v118, 0
    %vm129 = vcmask 1043456
    %v131 = vsel %vm129, %v123, 0
    %v134 = vsel %vm129, %v124, 0
    %136 = vmatprep.subr.mxu0 0.0
    %137 = vmatpush1.msra.mxu0 0.0
    %138 = vmatprep.subr.mxu0 0.0
    %139 = vmatpush1.msra.mxu0 0.0
    %140 = vmatprep.subr.mxu0 0.0
    %141 = vmatpush1.msra.mxu0 0.0
    %142 = vmatprep.subr.mxu0 0.0
    %143 = vmatpush1.msra.mxu0 0.0
    %144 = vmatprep.subr.mxu0 0.0
    %145 = vmatpush1.msra.mxu0 0.0
    %146 = vmatprep.subr.mxu0 0.0
    %147 = vmatpush1.msra.mxu0 0.0
    %148 = vmatprep.subr.mxu0 0.0
    %149 = vmatpush1.msra.mxu0 0.0
    %150 = vmatprep.subr.mxu0 0.0
    %151 = vmatpush1.msra.mxu0 0.0
    %152 = vmatprep.subr.mxu0 0.0
    %153 = vmatpush1.msra.mxu0 0.0
    %154 = vmatprep.subr.mxu0 0.0
    %155 = vmatpush1.msra.mxu0 0.0
    %156 = vmatprep.subr.mxu0 0.0
    %157 = vmatpush1.msra.mxu0 0.0
    %158 = vmatprep.subr.mxu0 0.0
    %159 = vmatpush1.msra.mxu0 0.0
    %160 = vmatprep.subr.mxu0 0.0
    %161 = vmatpush1.msra.mxu0 0.0
    %162 = vmatprep.subr.mxu0 %v134
    %163 = vmatpush1.msra.mxu0 %v131
    %164 = vmatprep.subr.mxu0 %v122
    %165 = vmatpush1.msra.mxu0 %v121
    %166 = vmatprep.subr.mxu0 %v120
    %167 = vmatpush1.msra.mxu0 %v119
    %168 = vmatprep.subr.mxu0 0.0
    %169 = vmatpush2.msra.mxu0 0.0
    %170 = vmatprep.subr.mxu0 0.0
    %171 = vmatpush2.msra.mxu0 0.0
    %172 = vmatprep.subr.mxu0 0.0
    %173 = vmatpush2.msra.mxu0 0.0
    %174 = vmatprep.subr.mxu0 0.0
    %175 = vmatpush2.msra.mxu0 0.0
    %176 = vmatprep.subr.mxu0 0.0
    %177 = vmatpush2.msra.mxu0 0.0
    %178 = vmatprep.subr.mxu0 0.0
    %179 = vmatpush2.msra.mxu0 0.0
    %180 = vmatprep.subr.mxu0 0.0
    %181 = vmatpush2.msra.mxu0 0.0
    %182 = vmatprep.subr.mxu0 0.0
    %183 = vmatpush2.msra.mxu0 0.0
    %184 = vmatprep.subr.mxu0 0.0
    %185 = vmatpush2.msra.mxu0 0.0
    %186 = vmatprep.subr.mxu0 0.0
    %187 = vmatpush2.msra.mxu0 0.0
    %188 = vmatprep.subr.mxu0 0.0
    %189 = vmatpush2.msra.mxu0 0.0
    %190 = vmatprep.subr.mxu0 0.0
    %191 = vmatpush2.msra.mxu0 0.0
    %192 = vmatprep.subr.mxu0 0.0
    %193 = vmatpush2.msra.mxu0 0.0
    %194 = vmatprep.subr.mxu0 0.0
    %195 = vmatpush2.msra.mxu0 0.0
    %196 = vmatprep.subr.mxu0 0.0
    %197 = vmatpush2.msra.mxu0 0.0
    %198 = vmatprep.subr.mxu0 0.0
    %199 = vmatpush2.msra.mxu0 0.0
    %200 = vmatprep.mubr.f32.mxu0 0.0
    %201 = vmatmul.mubr.f32.gmra.mxu0 %v127
    %v202 = vpop.f32.mrf.mxu0
    %v203 = vadd.f32 0.0, %v202
    %v204 = vpop.f32.mrf.mxu0
    %v205 = vadd.f32 0.0, %v204
    %206 = vdwg.mxu0
    %v207 = vld [vmem:[%s9] ss:$8 sm:$0x3]
    %s208 = scalar_lea.vmem %s9, 1
    %v209 = vld [vmem:[%s208] ss:$8 sm:$0x3]
    %v210 = vrot.slane %v203, 4
    %v211 = vadd.f32 %v203, %v210
    %v212 = vrot.slane %v211, 2
    %v213 = vadd.f32 %v211, %v212
    %v214 = vrot.slane %v213, 1
    %v215 = vadd.f32 %v213, %v214
    %v216 = vrot.slane %v205, 4
    %v217 = vadd.f32 %v205, %v216
    %v218 = vrot.slane %v217, 2
    %v219 = vadd.f32 %v217, %v218
    %v220 = vrot.slane %v219, 1
    %v221 = vadd.f32 %v219, %v220
    %v222 = vmul.f32 %v215, 0.125
    %v223 = vmul.f32 %v221, 0.125
    %v224 = vmul.f32 %v203, %v203
    %v225 = vmul.f32 %v205, %v205
    %v226 = vrot.slane %v224, 4
    %v227 = vadd.f32 %v224, %v226
    %v228 = vrot.slane %v227, 2
    %v229 = vadd.f32 %v227, %v228
    %v230 = vrot.slane %v229, 1
    %v231 = vadd.f32 %v229, %v230
    %v232 = vrot.slane %v225, 4
    %v233 = vadd.f32 %v225, %v232
    %v234 = vrot.slane %v233, 2
    %v235 = vadd.f32 %v233, %v234
    %v236 = vrot.slane %v235, 1
    %v237 = vadd.f32 %v235, %v236
    %v238 = vmul.f32 %v231, 0.125
    %v239 = vmul.f32 %v237, 0.125
    %v240 = vmul.f32 %v222, %v222
    %v241 = vmul.f32 %v223, %v223
    %v242 = vsub.f32 %v238, %v240
    %v243 = vsub.f32 %v239, %v241
    %v244 = vmax.f32 %v242, 0.0
    %v245 = vmax.f32 %v243, 0.0
    %v246 = vadd.f32 %v244, 1e-05
    %v247 = vadd.f32 %v245, 1e-05
    %v248 = vrsqrt.pop %v246
    %v249 = vrsqrt.pop %v247
    %v252 = vcombine.low %v248, %v249
    %v254 = vunpack.c.l.s4 1966171168
    %v255 = vunpack.c.0.s8 %v254
    %v256 = vlaneseq
    %v257 = vshrl.u32 %v256, 7
    %v258 = vsub.s32 %v255, %v257
    %v259 = vrot.slane %v252, %v258
    %v261 = vunpack.c.l.s4 1966171168
    %v262 = vunpack.c.0.s8 %v261
    %v263 = vlaneseq
    %v264 = vshrl.u32 %v263, 7
    %v265 = vsub.s32 %v262, %v264
    %v266 = vrot.slane %v259, %v265
    %v268 = vmul.f32 %v207, %v266
    %v270 = vlaneseq
    %v271 = vshrl.u32 %v270, 7
    %v272 = vsub.s32 0, %v271
    %v273 = vrot.slane %v268, %v272
    %v274 = vlaneseq
    %v275 = vshrl.u32 %v274, 7
    %v276 = vsub.s32 1, %v275
    %v277 = vrot.slane %v268, %v276
    %v280 = vmul.f32 %v203, %v273
    %v281 = vmul.f32 %v205, %v277
    %v282 = vmul.f32 %v222, %v273
    %v283 = vmul.f32 %v223, %v277
    %v286 = vcombine.low %v282, %v283
    %v288 = vunpack.c.l.s4 1966171168
    %v289 = vunpack.c.0.s8 %v288
    %v290 = vlaneseq
    %v291 = vshrl.u32 %v290, 7
    %v292 = vsub.s32 %v289, %v291
    %v293 = vrot.slane %v286, %v292
    %v295 = vunpack.c.l.s4 1966171168
    %v296 = vunpack.c.0.s8 %v295
    %v297 = vlaneseq
    %v298 = vshrl.u32 %v297, 7
    %v299 = vsub.s32 %v296, %v298
    %v300 = vrot.slane %v293, %v299
    %v302 = vsub.f32 %v209, %v300
    %v304 = vlaneseq
    %v305 = vshrl.u32 %v304, 7
    %v306 = vsub.s32 0, %v305
    %v307 = vrot.slane %v302, %v306
    %v308 = vlaneseq
    %v309 = vshrl.u32 %v308, 7
    %v310 = vsub.s32 1, %v309
    %v311 = vrot.slane %v302, %v310
    %v314 = vadd.f32 %v280, %v307
    %v315 = vadd.f32 %v281, %v311
    %v316 = vmax.f32 %v314, 0.0
    %v317 = vadd.f32 %v316, %v315
    %v318 = vld [vmem:[#allocation5] sm:$0xff]
    %v319 = vld [vmem:[#allocation5 + $0x8] sm:$0xff]
    %v320 = vld [vmem:[#allocation5 + $0x10] sm:$0xff]
    %v321 = vld [vmem:[#allocation5 + $0x18] sm:$0xff]
    %v322 = vld [vmem:[#allocation5 + $0x20] sm:$0xff]
    %v323 = vld [vmem:[#allocation5 + $0x28] sm:$0xff]
    %v324 = vld [vmem:[#allocation5 + $0x30] sm:$0xff]
    %v325 = vld [vmem:[#allocation5 + $0x38] sm:$0xff]
    %v326 = vld [vmem:[#allocation5 + $0x40] sm:$0xff]
    %v327 = vld [vmem:[#allocation5 + $0x48] sm:$0xff]
    %v328 = vld [vmem:[#allocation5 + $0x50] sm:$0xff]
    %v329 = vld [vmem:[#allocation5 + $0x58] sm:$0xff]
    %v330 = vld [vmem:[#allocation5 + $0x60] sm:$0xff]
    %v331 = vld [vmem:[#allocation5 + $0x68] sm:$0xff]
    %v332 = vld [vmem:[#allocation5 + $0x70] sm:$0xff]
    %v333 = vld [vmem:[#allocation5 + $0x78] sm:$0xff]
    %v334 = vld [vmem:[#allocation5 + $0x80] sm:$0xff]
    %v335 = vld [vmem:[#allocation5 + $0x88] sm:$0xff]
    %v336 = vld [vmem:[#allocation5 + $0x90] sm:$0xff]
    %v337 = vld [vmem:[#allocation5 + $0x98] sm:$0xff]
    %v338 = vld [vmem:[#allocation5 + $0xa0] sm:$0xff]
    %v339 = vld [vmem:[#allocation5 + $0xa8] sm:$0xff]
    %v340 = vld [vmem:[#allocation5 + $0xb0] sm:$0xff]
    %v341 = vld [vmem:[#allocation5 + $0xb8] sm:$0xff]
    %v342 = vld [vmem:[#allocation5 + $0xc0] sm:$0xff]
    %v343 = vld [vmem:[#allocation5 + $0xc8] sm:$0xff]
    %v344 = vld [vmem:[#allocation5 + $0xd0] sm:$0xff]
    %v345 = vld [vmem:[#allocation5 + $0xd8] sm:$0xff]
    %v346 = vld [vmem:[#allocation5 + $0xe0] sm:$0xff]
    %v347 = vld [vmem:[#allocation5 + $0xe8] sm:$0xff]
    %v348 = vld [vmem:[#allocation5 + $0xf0] sm:$0xff]
    %v349 = vld [vmem:[#allocation5 + $0xf8] sm:$0xff]
    %350 = vmatprep.subr.mxu0 %v349
    %351 = vmatpush1.msra.mxu0 %v348
    %352 = vmatprep.subr.mxu0 %v347
    %353 = vmatpush1.msra.mxu0 %v346
    %354 = vmatprep.subr.mxu0 %v345
    %355 = vmatpush1.msra.mxu0 %v344
    %356 = vmatprep.subr.mxu0 %v343
    %357 = vmatpush1.msra.mxu0 %v342
    %358 = vmatprep.subr.mxu0 %v341
    %359 = vmatpush1.msra.mxu0 %v340
    %360 = vmatprep.subr.mxu0 %v339
    %361 = vmatpush1.msra.mxu0 %v338
    %362 = vmatprep.subr.mxu0 %v337
    %363 = vmatpush1.msra.mxu0 %v336
    %364 = vmatprep.subr.mxu0 %v335
    %365 = vmatpush1.msra.mxu0 %v334
    %366 = vmatprep.subr.mxu0 %v333
    %367 = vmatpush1.msra.mxu0 %v332
    %368 = vmatprep.subr.mxu0 %v331
    %369 = vmatpush1.msra.mxu0 %v330
    %370 = vmatprep.subr.mxu0 %v329
    %371 = vmatpush1.msra.mxu0 %v328
    %372 = vmatprep.subr.mxu0 %v327
    %373 = vmatpush1.msra.mxu0 %v326
    %374 = vmatprep.subr.mxu0 %v325
    %375 = vmatpush1.msra.mxu0 %v324
    %376 = vmatprep.subr.mxu0 %v323
    %377 = vmatpush1.msra.mxu0 %v322
    %378 = vmatprep.subr.mxu0 %v321
    %379 = vmatpush1.msra.mxu0 %v320
    %380 = vmatprep.subr.mxu0 %v319
    %381 = vmatpush1.msra.mxu0 %v318
    %382 = vmatprep.subr.mxu0 0.0
    %383 = vmatpush2.msra.mxu0 0.0
    %384 = vmatprep.subr.mxu0 0.0
    %385 = vmatpush2.msra.mxu0 0.0
    %386 = vmatprep.subr.mxu0 0.0
    %387 = vmatpush2.msra.mxu0 0.0
    %388 = vmatprep.subr.mxu0 0.0
    %389 = vmatpush2.msra.mxu0 0.0
    %390 = vmatprep.subr.mxu0 0.0
    %391 = vmatpush2.msra.mxu0 0.0
    %392 = vmatprep.subr.mxu0 0.0
    %393 = vmatpush2.msra.mxu0 0.0
    %394 = vmatprep.subr.mxu0 0.0
    %395 = vmatpush2.msra.mxu0 0.0
    %396 = vmatprep.subr.mxu0 0.0
    %397 = vmatpush2.msra.mxu0 0.0
    %398 = vmatprep.subr.mxu0 0.0
    %399 = vmatpush2.msra.mxu0 0.0
    %400 = vmatprep.subr.mxu0 0.0
    %401 = vmatpush2.msra.mxu0 0.0
    %402 = vmatprep.subr.mxu0 0.0
    %403 = vmatpush2.msra.mxu0 0.0
    %404 = vmatprep.subr.mxu0 0.0
    %405 = vmatpush2.msra.mxu0 0.0
    %406 = vmatprep.subr.mxu0 0.0
    %407 = vmatpush2.msra.mxu0 0.0
    %408 = vmatprep.subr.mxu0 0.0
    %409 = vmatpush2.msra.mxu0 0.0
    %410 = vmatprep.subr.mxu0 0.0
    %411 = vmatpush2.msra.mxu0 0.0
    %412 = vmatprep.subr.mxu0 0.0
    %413 = vmatpush2.msra.mxu0 0.0
    %414 = vmatprep.mubr.f32.mxu0 0.0
    %415 = vmatmul.mubr.f32.gmra.mxu0 %v317
    %v416 = vpop.f32.mrf.mxu0
    %v417 = vadd.f32 0.0, %v416
    %v418 = vpop.f32.mrf.mxu0
    %v419 = vadd.f32 0.0, %v418
    %420 = vdwg.mxu0
    %s421 = scalar_lea.vmem %s9, 2
    %v422 = vld [vmem:[%s421] ss:$8 sm:$0x3]
    %s423 = scalar_lea.vmem %s9, 3
    %v424 = vld [vmem:[%s423] ss:$8 sm:$0x3]
    %v425 = vrot.slane %v417, 4
    %v426 = vadd.f32 %v417, %v425
    %v427 = vrot.slane %v426, 2
    %v428 = vadd.f32 %v426, %v427
    %v429 = vrot.slane %v428, 1
    %v430 = vadd.f32 %v428, %v429
    %v431 = vrot.slane %v419, 4
    %v432 = vadd.f32 %v419, %v431
    %v433 = vrot.slane %v432, 2
    %v434 = vadd.f32 %v432, %v433
    %v435 = vrot.slane %v434, 1
    %v436 = vadd.f32 %v434, %v435
    %v437 = vmul.f32 %v430, 0.125
    %v438 = vmul.f32 %v436, 0.125
    %v439 = vmul.f32 %v417, %v417
    %v440 = vmul.f32 %v419, %v419
    %v441 = vrot.slane %v439, 4
    %v442 = vadd.f32 %v439, %v441
    %v443 = vrot.slane %v442, 2
    %v444 = vadd.f32 %v442, %v443
    %v445 = vrot.slane %v444, 1
    %v446 = vadd.f32 %v444, %v445
    %v447 = vrot.slane %v440, 4
    %v448 = vadd.f32 %v440, %v447
    %v449 = vrot.slane %v448, 2
    %v450 = vadd.f32 %v448, %v449
    %v451 = vrot.slane %v450, 1
    %v452 = vadd.f32 %v450, %v451
    %v453 = vmul.f32 %v446, 0.125
    %v454 = vmul.f32 %v452, 0.125
    %v455 = vmul.f32 %v437, %v437
    %v456 = vmul.f32 %v438, %v438
    %v457 = vsub.f32 %v453, %v455
    %v458 = vsub.f32 %v454, %v456
    %v459 = vmax.f32 %v457, 0.0
    %v460 = vmax.f32 %v458, 0.0
    %v461 = vadd.f32 %v459, 1e-05
    %v462 = vadd.f32 %v460, 1e-05
    %v463 = vrsqrt.pop %v461
    %v464 = vrsqrt.pop %v462
    %v467 = vcombine.low %v463, %v464
    %v469 = vunpack.c.l.s4 1966171168
    %v470 = vunpack.c.0.s8 %v469
    %v471 = vlaneseq
    %v472 = vshrl.u32 %v471, 7
    %v473 = vsub.s32 %v470, %v472
    %v474 = vrot.slane %v467, %v473
    %v476 = vunpack.c.l.s4 1966171168
    %v477 = vunpack.c.0.s8 %v476
    %v478 = vlaneseq
    %v479 = vshrl.u32 %v478, 7
    %v480 = vsub.s32 %v477, %v479
    %v481 = vrot.slane %v474, %v480
    %v483 = vmul.f32 %v422, %v481
    %v485 = vlaneseq
    %v486 = vshrl.u32 %v485, 7
    %v487 = vsub.s32 0, %v486
    %v488 = vrot.slane %v483, %v487
    %v489 = vlaneseq
    %v490 = vshrl.u32 %v489, 7
    %v491 = vsub.s32 1, %v490
    %v492 = vrot.slane %v483, %v491
    %v495 = vmul.f32 %v417, %v488
    %v496 = vmul.f32 %v419, %v492
    %v497 = vmul.f32 %v437, %v488
    %v498 = vmul.f32 %v438, %v492
    %v501 = vcombine.low %v497, %v498
    %v503 = vunpack.c.l.s4 1966171168
    %v504 = vunpack.c.0.s8 %v503
    %v505 = vlaneseq
    %v506 = vshrl.u32 %v505, 7
    %v507 = vsub.s32 %v504, %v506
    %v508 = vrot.slane %v501, %v507
    %v510 = vunpack.c.l.s4 1966171168
    %v511 = vunpack.c.0.s8 %v510
    %v512 = vlaneseq
    %v513 = vshrl.u32 %v512, 7
    %v514 = vsub.s32 %v511, %v513
    %v515 = vrot.slane %v508, %v514
    %v517 = vsub.f32 %v424, %v515
    %v519 = vlaneseq
    %v520 = vshrl.u32 %v519, 7
    %v521 = vsub.s32 0, %v520
    %v522 = vrot.slane %v517, %v521
    %v523 = vlaneseq
    %v524 = vshrl.u32 %v523, 7
    %v525 = vsub.s32 1, %v524
    %v526 = vrot.slane %v517, %v525
    %v529 = vadd.f32 %v495, %v522
    %v530 = vadd.f32 %v496, %v526
    %v531 = vmax.f32 %v529, 0.0
    %v532 = vmax.f32 %v530, 0.0
    %v533 = vld [vmem:[#allocation7] sm:$0xff]
    %v534 = vld [vmem:[#allocation7 + $0x8] sm:$0xff]
    %v535 = vld [vmem:[#allocation7 + $0x10] sm:$0xff]
    %v536 = vld [vmem:[#allocation7 + $0x18] sm:$0xff]
    %v537 = vld [vmem:[#allocation7 + $0x20] sm:$0xff]
    %v538 = vld [vmem:[#allocation7 + $0x28] sm:$0xff]
    %v539 = vld [vmem:[#allocation7 + $0x30] sm:$0xff]
    %v540 = vld [vmem:[#allocation7 + $0x38] sm:$0xff]
    %v541 = vld [vmem:[#allocation7 + $0x40] sm:$0xff]
    %v542 = vld [vmem:[#allocation7 + $0x48] sm:$0xff]
    %v543 = vld [vmem:[#allocation7 + $0x50] sm:$0xff]
    %v544 = vld [vmem:[#allocation7 + $0x58] sm:$0xff]
    %v545 = vld [vmem:[#allocation7 + $0x60] sm:$0xff]
    %v546 = vld [vmem:[#allocation7 + $0x68] sm:$0xff]
    %v547 = vld [vmem:[#allocation7 + $0x70] sm:$0xff]
    %v548 = vld [vmem:[#allocation7 + $0x78] sm:$0xff]
    %v549 = vld [vmem:[#allocation7 + $0x80] sm:$0xff]
    %v550 = vld [vmem:[#allocation7 + $0x88] sm:$0xff]
    %v551 = vld [vmem:[#allocation7 + $0x90] sm:$0xff]
    %v552 = vld [vmem:[#allocation7 + $0x98] sm:$0xff]
    %v553 = vld [vmem:[#allocation7 + $0xa0] sm:$0xff]
    %v554 = vld [vmem:[#allocation7 + $0xa8] sm:$0xff]
    %v555 = vld [vmem:[#allocation7 + $0xb0] sm:$0xff]
    %v556 = vld [vmem:[#allocation7 + $0xb8] sm:$0xff]
    %v557 = vld [vmem:[#allocation7 + $0xc0] sm:$0xff]
    %v558 = vld [vmem:[#allocation7 + $0xc8] sm:$0xff]
    %v559 = vld [vmem:[#allocation7 + $0xd0] sm:$0xff]
    %v560 = vld [vmem:[#allocation7 + $0xd8] sm:$0xff]
    %v561 = vld [vmem:[#allocation7 + $0xe0] sm:$0xff]
    %v562 = vld [vmem:[#allocation7 + $0xe8] sm:$0xff]
    %v563 = vld [vmem:[#allocation7 + $0xf0] sm:$0xff]
    %v564 = vld [vmem:[#allocation7 + $0xf8] sm:$0xff]
    %v565 = vld [vmem:[#allocation7 + $0x100] sm:$0xff]
    %v566 = vld [vmem:[#allocation7 + $0x108] sm:$0xff]
    %v567 = vld [vmem:[#allocation7 + $0x110] sm:$0xff]
    %v568 = vld [vmem:[#allocation7 + $0x118] sm:$0xff]
    %v569 = vld [vmem:[#allocation7 + $0x120] sm:$0xff]
    %v570 = vld [vmem:[#allocation7 + $0x128] sm:$0xff]
    %v571 = vld [vmem:[#allocation7 + $0x130] sm:$0xff]
    %v572 = vld [vmem:[#allocation7 + $0x138] sm:$0xff]
    %v573 = vld [vmem:[#allocation7 + $0x140] sm:$0xff]
    %v574 = vld [vmem:[#allocation7 + $0x148] sm:$0xff]
    %v575 = vld [vmem:[#allocation7 + $0x150] sm:$0xff]
    %v576 = vld [vmem:[#allocation7 + $0x158] sm:$0xff]
    %v577 = vld [vmem:[#allocation7 + $0x160] sm:$0xff]
    %v578 = vld [vmem:[#allocation7 + $0x168] sm:$0xff]
    %v579 = vld [vmem:[#allocation7 + $0x170] sm:$0xff]
    %v580 = vld [vmem:[#allocation7 + $0x178] sm:$0xff]
    %v581 = vld [vmem:[#allocation7 + $0x180] sm:$0xff]
    %v582 = vld [vmem:[#allocation7 + $0x188] sm:$0xff]
    %v583 = vld [vmem:[#allocation7 + $0x190] sm:$0xff]
    %v584 = vld [vmem:[#allocation7 + $0x198] sm:$0xff]
    %v585 = vld [vmem:[#allocation7 + $0x1a0] sm:$0xff]
    %v586 = vld [vmem:[#allocation7 + $0x1a8] sm:$0xff]
    %v587 = vld [vmem:[#allocation7 + $0x1b0] sm:$0xff]
    %v588 = vld [vmem:[#allocation7 + $0x1b8] sm:$0xff]
    %v589 = vld [vmem:[#allocation7 + $0x1c0] sm:$0xff]
    %v590 = vld [vmem:[#allocation7 + $0x1c8] sm:$0xff]
    %v591 = vld [vmem:[#allocation7 + $0x1d0] sm:$0xff]
    %v592 = vld [vmem:[#allocation7 + $0x1d8] sm:$0xff]
    %v593 = vld [vmem:[#allocation7 + $0x1e0] sm:$0xff]
    %v594 = vld [vmem:[#allocation7 + $0x1e8] sm:$0xff]
    %v595 = vld [vmem:[#allocation7 + $0x1f0] sm:$0xff]
    %v596 = vld [vmem:[#allocation7 + $0x1f8] sm:$0xff]
    %597 = vmatprep.subr.mxu0 %v564
    %598 = vmatpush1.msra.mxu0 %v563
    %599 = vmatprep.subr.mxu0 %v562
    %600 = vmatpush1.msra.mxu0 %v561
    %601 = vmatprep.subr.mxu0 %v560
    %602 = vmatpush1.msra.mxu0 %v559
    %603 = vmatprep.subr.mxu0 %v558
    %604 = vmatpush1.msra.mxu0 %v557
    %605 = vmatprep.subr.mxu0 %v556
    %606 = vmatpush1.msra.mxu0 %v555
    %607 = vmatprep.subr.mxu0 %v554
    %608 = vmatpush1.msra.mxu0 %v553
    %609 = vmatprep.subr.mxu0 %v552
    %610 = vmatpush1.msra.mxu0 %v551
    %611 = vmatprep.subr.mxu0 %v550
    %612 = vmatpush1.msra.mxu0 %v549
    %613 = vmatprep.subr.mxu0 %v548
    %614 = vmatpush1.msra.mxu0 %v547
    %615 = vmatprep.subr.mxu0 %v546
    %616 = vmatpush1.msra.mxu0 %v545
    %617 = vmatprep.subr.mxu0 %v544
    %618 = vmatpush1.msra.mxu0 %v543
    %619 = vmatprep.subr.mxu0 %v542
    %620 = vmatpush1.msra.mxu0 %v541
    %621 = vmatprep.subr.mxu0 %v540
    %622 = vmatpush1.msra.mxu0 %v539
    %623 = vmatprep.subr.mxu0 %v538
    %624 = vmatpush1.msra.mxu0 %v537
    %625 = vmatprep.subr.mxu0 %v536
    %626 = vmatpush1.msra.mxu0 %v535
    %627 = vmatprep.subr.mxu0 %v534
    %628 = vmatpush1.msra.mxu0 %v533
    %629 = vmatprep.subr.mxu0 %v596
    %630 = vmatpush2.msra.mxu0 %v595
    %631 = vmatprep.subr.mxu0 %v594
    %632 = vmatpush2.msra.mxu0 %v593
    %633 = vmatprep.subr.mxu0 %v592
    %634 = vmatpush2.msra.mxu0 %v591
    %635 = vmatprep.subr.mxu0 %v590
    %636 = vmatpush2.msra.mxu0 %v589
    %637 = vmatprep.subr.mxu0 %v588
    %638 = vmatpush2.msra.mxu0 %v587
    %639 = vmatprep.subr.mxu0 %v586
    %640 = vmatpush2.msra.mxu0 %v585
    %641 = vmatprep.subr.mxu0 %v584
    %642 = vmatpush2.msra.mxu0 %v583
    %643 = vmatprep.subr.mxu0 %v582
    %644 = vmatpush2.msra.mxu0 %v581
    %645 = vmatprep.subr.mxu0 %v580
    %646 = vmatpush2.msra.mxu0 %v579
    %647 = vmatprep.subr.mxu0 %v578
    %648 = vmatpush2.msra.mxu0 %v577
    %649 = vmatprep.subr.mxu0 %v576
    %650 = vmatpush2.msra.mxu0 %v575
    %651 = vmatprep.subr.mxu0 %v574
    %652 = vmatpush2.msra.mxu0 %v573
    %653 = vmatprep.subr.mxu0 %v572
    %654 = vmatpush2.msra.mxu0 %v571
    %655 = vmatprep.subr.mxu0 %v570
    %656 = vmatpush2.msra.mxu0 %v569
    %657 = vmatprep.subr.mxu0 %v568
    %658 = vmatpush2.msra.mxu0 %v567
    %659 = vmatprep.subr.mxu0 %v566
    %660 = vmatpush2.msra.mxu0 %v565
    %661 = vmatprep.mubr.f32.mxu0 %v532
    %662 = vmatmul.mubr.f32.gmra.mxu0 %v531
    %v663 = vpop.f32.mrf.mxu0
    %v664 = vadd.f32 0.0, %v663
    %v665 = vpop.f32.mrf.mxu0
    %v666 = vadd.f32 0.0, %v665
    %667 = vdwg.mxu0
    %s668 = scalar_lea.vmem %s9, 4
    %v669 = vld [vmem:[%s668] ss:$8 sm:$0x3]
    %s670 = scalar_lea.vmem %s9, 5
    %v671 = vld [vmem:[%s670] ss:$8 sm:$0x3]
    %v672 = vrot.slane %v664, 4
    %v673 = vadd.f32 %v664, %v672
    %v674 = vrot.slane %v673, 2
    %v675 = vadd.f32 %v673, %v674
    %v676 = vrot.slane %v675, 1
    %v677 = vadd.f32 %v675, %v676
    %v678 = vrot.slane %v666, 4
    %v679 = vadd.f32 %v666, %v678
    %v680 = vrot.slane %v679, 2
    %v681 = vadd.f32 %v679, %v680
    %v682 = vrot.slane %v681, 1
    %v683 = vadd.f32 %v681, %v682
    %v684 = vmul.f32 %v677, 0.125
    %v685 = vmul.f32 %v683, 0.125
    %v686 = vmul.f32 %v664, %v664
    %v687 = vmul.f32 %v666, %v666
    %v688 = vrot.slane %v686, 4
    %v689 = vadd.f32 %v686, %v688
    %v690 = vrot.slane %v689, 2
    %v691 = vadd.f32 %v689, %v690
    %v692 = vrot.slane %v691, 1
    %v693 = vadd.f32 %v691, %v692
    %v694 = vrot.slane %v687, 4
    %v695 = vadd.f32 %v687, %v694
    %v696 = vrot.slane %v695, 2
    %v697 = vadd.f32 %v695, %v696
    %v698 = vrot.slane %v697, 1
    %v699 = vadd.f32 %v697, %v698
    %v700 = vmul.f32 %v693, 0.125
    %v701 = vmul.f32 %v699, 0.125
    %v702 = vmul.f32 %v684, %v684
    %v703 = vmul.f32 %v685, %v685
    %v704 = vsub.f32 %v700, %v702
    %v705 = vsub.f32 %v701, %v703
    %v706 = vmax.f32 %v704, 0.0
    %v707 = vmax.f32 %v705, 0.0
    %v708 = vadd.f32 %v706, 1e-05
    %v709 = vadd.f32 %v707, 1e-05
    %v710 = vrsqrt.pop %v708
    %v711 = vrsqrt.pop %v709
    %v714 = vcombine.low %v710, %v711
    %v716 = vunpack.c.l.s4 1966171168
    %v717 = vunpack.c.0.s8 %v716
    %v718 = vlaneseq
    %v719 = vshrl.u32 %v718, 7
    %v720 = vsub.s32 %v717, %v719
    %v721 = vrot.slane %v714, %v720
    %v723 = vunpack.c.l.s4 1966171168
    %v724 = vunpack.c.0.s8 %v723
    %v725 = vlaneseq
    %v726 = vshrl.u32 %v725, 7
    %v727 = vsub.s32 %v724, %v726
    %v728 = vrot.slane %v721, %v727
    %v730 = vmul.f32 %v669, %v728
    %v732 = vlaneseq
    %v733 = vshrl.u32 %v732, 7
    %v734 = vsub.s32 0, %v733
    %v735 = vrot.slane %v730, %v734
    %v736 = vlaneseq
    %v737 = vshrl.u32 %v736, 7
    %v738 = vsub.s32 1, %v737
    %v739 = vrot.slane %v730, %v738
    %v742 = vmul.f32 %v664, %v735
    %v743 = vmul.f32 %v666, %v739
    %v744 = vmul.f32 %v684, %v735
    %v745 = vmul.f32 %v685, %v739
    %v748 = vcombine.low %v744, %v745
    %v750 = vunpack.c.l.s4 1966171168
    %v751 = vunpack.c.0.s8 %v750
    %v752 = vlaneseq
    %v753 = vshrl.u32 %v752, 7
    %v754 = vsub.s32 %v751, %v753
    %v755 = vrot.slane %v748, %v754
    %v757 = vunpack.c.l.s4 1966171168
    %v758 = vunpack.c.0.s8 %v757
    %v759 = vlaneseq
    %v760 = vshrl.u32 %v759, 7
    %v761 = vsub.s32 %v758, %v760
    %v762 = vrot.slane %v755, %v761
    %v764 = vsub.f32 %v671, %v762
    %v766 = vlaneseq
    %v767 = vshrl.u32 %v766, 7
    %v768 = vsub.s32 0, %v767
    %v769 = vrot.slane %v764, %v768
    %v770 = vlaneseq
    %v771 = vshrl.u32 %v770, 7
    %v772 = vsub.s32 1, %v771
    %v773 = vrot.slane %v764, %v772
    %v776 = vadd.f32 %v742, %v769
    %v777 = vadd.f32 %v743, %v773
    %v778 = vadd.f32 %v531, %v776
    %v779 = vadd.f32 %v532, %v777
    %v780 = vld [vmem:[#allocation8] sm:$0xff]
    %v781 = vld [vmem:[#allocation8 + $0x8] sm:$0xff]
    %v782 = vld [vmem:[#allocation8 + $0x10] sm:$0xff]
    %v783 = vld [vmem:[#allocation8 + $0x18] sm:$0xff]
    %v784 = vld [vmem:[#allocation8 + $0x20] sm:$0xff]
    %v785 = vld [vmem:[#allocation8 + $0x28] sm:$0xff]
    %v786 = vld [vmem:[#allocation8 + $0x30] sm:$0xff]
    %v787 = vld [vmem:[#allocation8 + $0x38] sm:$0xff]
    %v788 = vld [vmem:[#allocation8 + $0x40] sm:$0xff]
    %v789 = vld [vmem:[#allocation8 + $0x48] sm:$0xff]
    %v790 = vld [vmem:[#allocation8 + $0x50] sm:$0xff]
    %v791 = vld [vmem:[#allocation8 + $0x58] sm:$0xff]
    %v792 = vld [vmem:[#allocation8 + $0x60] sm:$0xff]
    %v793 = vld [vmem:[#allocation8 + $0x68] sm:$0xff]
    %v794 = vld [vmem:[#allocation8 + $0x70] sm:$0xff]
    %v795 = vld [vmem:[#allocation8 + $0x78] sm:$0xff]
    %v796 = vld [vmem:[#allocation8 + $0x80] sm:$0xff]
    %v797 = vld [vmem:[#allocation8 + $0x88] sm:$0xff]
    %v798 = vld [vmem:[#allocation8 + $0x90] sm:$0xff]
    %v799 = vld [vmem:[#allocation8 + $0x98] sm:$0xff]
    %v800 = vld [vmem:[#allocation8 + $0xa0] sm:$0xff]
    %v801 = vld [vmem:[#allocation8 + $0xa8] sm:$0xff]
    %v802 = vld [vmem:[#allocation8 + $0xb0] sm:$0xff]
    %v803 = vld [vmem:[#allocation8 + $0xb8] sm:$0xff]
    %v804 = vld [vmem:[#allocation8 + $0xc0] sm:$0xff]
    %v805 = vld [vmem:[#allocation8 + $0xc8] sm:$0xff]
    %v806 = vld [vmem:[#allocation8 + $0xd0] sm:$0xff]
    %v807 = vld [vmem:[#allocation8 + $0xd8] sm:$0xff]
    %v808 = vld [vmem:[#allocation8 + $0xe0] sm:$0xff]
    %v809 = vld [vmem:[#allocation8 + $0xe8] sm:$0xff]
    %v810 = vld [vmem:[#allocation8 + $0xf0] sm:$0xff]
    %v811 = vld [vmem:[#allocation8 + $0xf8] sm:$0xff]
    %v812 = vld [vmem:[#allocation8 + $0x100] sm:$0xff]
    %v813 = vld [vmem:[#allocation8 + $0x108] sm:$0xff]
    %v814 = vld [vmem:[#allocation8 + $0x110] sm:$0xff]
    %v815 = vld [vmem:[#allocation8 + $0x118] sm:$0xff]
    %v816 = vld [vmem:[#allocation8 + $0x120] sm:$0xff]
    %v817 = vld [vmem:[#allocation8 + $0x128] sm:$0xff]
    %v818 = vld [vmem:[#allocation8 + $0x130] sm:$0xff]
    %v819 = vld [vmem:[#allocation8 + $0x138] sm:$0xff]
    %v820 = vld [vmem:[#allocation8 + $0x140] sm:$0xff]
    %v821 = vld [vmem:[#allocation8 + $0x148] sm:$0xff]
    %v822 = vld [vmem:[#allocation8 + $0x150] sm:$0xff]
    %v823 = vld [vmem:[#allocation8 + $0x158] sm:$0xff]
    %v824 = vld [vmem:[#allocation8 + $0x160] sm:$0xff]
    %v825 = vld [vmem:[#allocation8 + $0x168] sm:$0xff]
    %v826 = vld [vmem:[#allocation8 + $0x170] sm:$0xff]
    %v827 = vld [vmem:[#allocation8 + $0x178] sm:$0xff]
    %v828 = vld [vmem:[#allocation8 + $0x180] sm:$0xff]
    %v829 = vld [vmem:[#allocation8 + $0x188] sm:$0xff]
    %v830 = vld [vmem:[#allocation8 + $0x190] sm:$0xff]
    %v831 = vld [vmem:[#allocation8 + $0x198] sm:$0xff]
    %v832 = vld [vmem:[#allocation8 + $0x1a0] sm:$0xff]
    %v833 = vld [vmem:[#allocation8 + $0x1a8] sm:$0xff]
    %v834 = vld [vmem:[#allocation8 + $0x1b0] sm:$0xff]
    %v835 = vld [vmem:[#allocation8 + $0x1b8] sm:$0xff]
    %v836 = vld [vmem:[#allocation8 + $0x1c0] sm:$0xff]
    %v837 = vld [vmem:[#allocation8 + $0x1c8] sm:$0xff]
    %v838 = vld [vmem:[#allocation8 + $0x1d0] sm:$0xff]
    %v839 = vld [vmem:[#allocation8 + $0x1d8] sm:$0xff]
    %v840 = vld [vmem:[#allocation8 + $0x1e0] sm:$0xff]
    %v841 = vld [vmem:[#allocation8 + $0x1e8] sm:$0xff]
    %v842 = vld [vmem:[#allocation8 + $0x1f0] sm:$0xff]
    %v843 = vld [vmem:[#allocation8 + $0x1f8] sm:$0xff]
    %v844 = vld [vmem:[#allocation8 + $0x200] sm:$0xff]
    %v845 = vld [vmem:[#allocation8 + $0x208] sm:$0xff]
    %v846 = vld [vmem:[#allocation8 + $0x210] sm:$0xff]
    %v847 = vld [vmem:[#allocation8 + $0x218] sm:$0xff]
    %v848 = vld [vmem:[#allocation8 + $0x220] sm:$0xff]
    %v849 = vld [vmem:[#allocation8 + $0x228] sm:$0xff]
    %v850 = vld [vmem:[#allocation8 + $0x230] sm:$0xff]
    %v851 = vld [vmem:[#allocation8 + $0x238] sm:$0xff]
    %v852 = vld [vmem:[#allocation8 + $0x240] sm:$0xff]
    %v853 = vld [vmem:[#allocation8 + $0x248] sm:$0xff]
    %v854 = vld [vmem:[#allocation8 + $0x250] sm:$0xff]
    %v855 = vld [vmem:[#allocation8 + $0x258] sm:$0xff]
    %v856 = vld [vmem:[#allocation8 + $0x260] sm:$0xff]
    %v857 = vld [vmem:[#allocation8 + $0x268] sm:$0xff]
    %v858 = vld [vmem:[#allocation8 + $0x270] sm:$0xff]
    %v859 = vld [vmem:[#allocation8 + $0x278] sm:$0xff]
    %v860 = vld [vmem:[#allocation8 + $0x280] sm:$0xff]
    %v861 = vld [vmem:[#allocation8 + $0x288] sm:$0xff]
    %v862 = vld [vmem:[#allocation8 + $0x290] sm:$0xff]
    %v863 = vld [vmem:[#allocation8 + $0x298] sm:$0xff]
    %v864 = vld [vmem:[#allocation8 + $0x2a0] sm:$0xff]
    %v865 = vld [vmem:[#allocation8 + $0x2a8] sm:$0xff]
    %v866 = vld [vmem:[#allocation8 + $0x2b0] sm:$0xff]
    %v867 = vld [vmem:[#allocation8 + $0x2b8] sm:$0xff]
    %v868 = vld [vmem:[#allocation8 + $0x2c0] sm:$0xff]
    %v869 = vld [vmem:[#allocation8 + $0x2c8] sm:$0xff]
    %v870 = vld [vmem:[#allocation8 + $0x2d0] sm:$0xff]
    %v871 = vld [vmem:[#allocation8 + $0x2d8] sm:$0xff]
    %v872 = vld [vmem:[#allocation8 + $0x2e0] sm:$0xff]
    %v873 = vld [vmem:[#allocation8 + $0x2e8] sm:$0xff]
    %v874 = vld [vmem:[#allocation8 + $0x2f0] sm:$0xff]
    %v875 = vld [vmem:[#allocation8 + $0x2f8] sm:$0xff]
    %v876 = vld [vmem:[#allocation8 + $0x300] sm:$0xff]
    %v877 = vld [vmem:[#allocation8 + $0x308] sm:$0xff]
    %v878 = vld [vmem:[#allocation8 + $0x310] sm:$0xff]
    %v879 = vld [vmem:[#allocation8 + $0x318] sm:$0xff]
    %v880 = vld [vmem:[#allocation8 + $0x320] sm:$0xff]
    %v881 = vld [vmem:[#allocation8 + $0x328] sm:$0xff]
    %v882 = vld [vmem:[#allocation8 + $0x330] sm:$0xff]
    %v883 = vld [vmem:[#allocation8 + $0x338] sm:$0xff]
    %v884 = vld [vmem:[#allocation8 + $0x340] sm:$0xff]
    %v885 = vld [vmem:[#allocation8 + $0x348] sm:$0xff]
    %v886 = vld [vmem:[#allocation8 + $0x350] sm:$0xff]
    %v887 = vld [vmem:[#allocation8 + $0x358] sm:$0xff]
    %v888 = vld [vmem:[#allocation8 + $0x360] sm:$0xff]
    %v889 = vld [vmem:[#allocation8 + $0x368] sm:$0xff]
    %v890 = vld [vmem:[#allocation8 + $0x370] sm:$0xff]
    %v891 = vld [vmem:[#allocation8 + $0x378] sm:$0xff]
    %v892 = vld [vmem:[#allocation8 + $0x380] sm:$0xff]
    %v893 = vld [vmem:[#allocation8 + $0x388] sm:$0xff]
    %v894 = vld [vmem:[#allocation8 + $0x390] sm:$0xff]
    %v895 = vld [vmem:[#allocation8 + $0x398] sm:$0xff]
    %v896 = vld [vmem:[#allocation8 + $0x3a0] sm:$0xff]
    %v897 = vld [vmem:[#allocation8 + $0x3a8] sm:$0xff]
    %v898 = vld [vmem:[#allocation8 + $0x3b0] sm:$0xff]
    %v899 = vld [vmem:[#allocation8 + $0x3b8] sm:$0xff]
    %v900 = vld [vmem:[#allocation8 + $0x3c0] sm:$0xff]
    %v901 = vld [vmem:[#allocation8 + $0x3c8] sm:$0xff]
    %v902 = vld [vmem:[#allocation8 + $0x3d0] sm:$0xff]
    %v903 = vld [vmem:[#allocation8 + $0x3d8] sm:$0xff]
    %v904 = vld [vmem:[#allocation8 + $0x3e0] sm:$0xff]
    %v905 = vld [vmem:[#allocation8 + $0x3e8] sm:$0xff]
    %v906 = vld [vmem:[#allocation8 + $0x3f0] sm:$0xff]
    %v907 = vld [vmem:[#allocation8 + $0x3f8] sm:$0xff]
    %908 = vmatprep.subr.mxu0 %v841
    %909 = vmatpush1.msra.mxu0 %v840
    %910 = vmatprep.subr.mxu0 %v837
    %911 = vmatpush1.msra.mxu0 %v836
    %912 = vmatprep.subr.mxu0 %v833
    %913 = vmatpush1.msra.mxu0 %v832
    %914 = vmatprep.subr.mxu0 %v829
    %915 = vmatpush1.msra.mxu0 %v828
    %916 = vmatprep.subr.mxu0 %v825
    %917 = vmatpush1.msra.mxu0 %v824
    %918 = vmatprep.subr.mxu0 %v821
    %919 = vmatpush1.msra.mxu0 %v820
    %920 = vmatprep.subr.mxu0 %v817
    %921 = vmatpush1.msra.mxu0 %v816
    %922 = vmatprep.subr.mxu0 %v813
    %923 = vmatpush1.msra.mxu0 %v812
    %924 = vmatprep.subr.mxu0 %v809
    %925 = vmatpush1.msra.mxu0 %v808
    %926 = vmatprep.subr.mxu0 %v805
    %927 = vmatpush1.msra.mxu0 %v804
    %928 = vmatprep.subr.mxu0 %v801
    %929 = vmatpush1.msra.mxu0 %v800
    %930 = vmatprep.subr.mxu0 %v797
    %931 = vmatpush1.msra.mxu0 %v796
    %932 = vmatprep.subr.mxu0 %v793
    %933 = vmatpush1.msra.mxu0 %v792
    %934 = vmatprep.subr.mxu0 %v789
    %935 = vmatpush1.msra.mxu0 %v788
    %936 = vmatprep.subr.mxu0 %v785
    %937 = vmatpush1.msra.mxu0 %v784
    %938 = vmatprep.subr.mxu0 %v781
    %939 = vmatpush1.msra.mxu0 %v780
    %940 = vmatprep.subr.mxu0 %v905
    %941 = vmatpush2.msra.mxu0 %v904
    %942 = vmatprep.subr.mxu0 %v901
    %943 = vmatpush2.msra.mxu0 %v900
    %944 = vmatprep.subr.mxu0 %v897
    %945 = vmatpush2.msra.mxu0 %v896
    %946 = vmatprep.subr.mxu0 %v893
    %947 = vmatpush2.msra.mxu0 %v892
    %948 = vmatprep.subr.mxu0 %v889
    %949 = vmatpush2.msra.mxu0 %v888
    %950 = vmatprep.subr.mxu0 %v885
    %951 = vmatpush2.msra.mxu0 %v884
    %952 = vmatprep.subr.mxu0 %v881
    %953 = vmatpush2.msra.mxu0 %v880
    %954 = vmatprep.subr.mxu0 %v877
    %955 = vmatpush2.msra.mxu0 %v876
    %956 = vmatprep.subr.mxu0 %v873
    %957 = vmatpush2.msra.mxu0 %v872
    %958 = vmatprep.subr.mxu0 %v869
    %959 = vmatpush2.msra.mxu0 %v868
    %960 = vmatprep.subr.mxu0 %v865
    %961 = vmatpush2.msra.mxu0 %v864
    %962 = vmatprep.subr.mxu0 %v861
    %963 = vmatpush2.msra.mxu0 %v860
    %964 = vmatprep.subr.mxu0 %v857
    %965 = vmatpush2.msra.mxu0 %v856
    %966 = vmatprep.subr.mxu0 %v853
    %967 = vmatpush2.msra.mxu0 %v852
    %968 = vmatprep.subr.mxu0 %v849
    %969 = vmatpush2.msra.mxu0 %v848
    %970 = vmatprep.subr.mxu0 %v845
    %971 = vmatpush2.msra.mxu0 %v844
    %972 = vmatprep.mubr.f32.mxu0 %v779
    %973 = vmatmul.mubr.f32.gmra.mxu0 %v778
    %v974 = vpop.f32.mrf.mxu0
    %v975 = vadd.f32 0.0, %v974
    %v976 = vpop.f32.mrf.mxu0
    %v977 = vadd.f32 0.0, %v976
    %978 = vdwg.mxu0
    %979 = vmatprep.subr.mxu0 %v843
    %980 = vmatpush1.msra.mxu0 %v842
    %981 = vmatprep.subr.mxu0 %v839
    %982 = vmatpush1.msra.mxu0 %v838
    %983 = vmatprep.subr.mxu0 %v835
    %984 = vmatpush1.msra.mxu0 %v834
    %985 = vmatprep.subr.mxu0 %v831
    %986 = vmatpush1.msra.mxu0 %v830
    %987 = vmatprep.subr.mxu0 %v827
    %988 = vmatpush1.msra.mxu0 %v826
    %989 = vmatprep.subr.mxu0 %v823
    %990 = vmatpush1.msra.mxu0 %v822
    %991 = vmatprep.subr.mxu0 %v819
    %992 = vmatpush1.msra.mxu0 %v818
    %993 = vmatprep.subr.mxu0 %v815
    %994 = vmatpush1.msra.mxu0 %v814
    %995 = vmatprep.subr.mxu0 %v811
    %996 = vmatpush1.msra.mxu0 %v810
    %997 = vmatprep.subr.mxu0 %v807
    %998 = vmatpush1.msra.mxu0 %v806
    %999 = vmatprep.subr.mxu0 %v803
    %1000 = vmatpush1.msra.mxu0 %v802
    %1001 = vmatprep.subr.mxu0 %v799
    %1002 = vmatpush1.msra.mxu0 %v798
    %1003 = vmatprep.subr.mxu0 %v795
    %1004 = vmatpush1.msra.mxu0 %v794
    %1005 = vmatprep.subr.mxu0 %v791
    %1006 = vmatpush1.msra.mxu0 %v790
    %1007 = vmatprep.subr.mxu0 %v787
    %1008 = vmatpush1.msra.mxu0 %v786
    %1009 = vmatprep.subr.mxu0 %v783
    %1010 = vmatpush1.msra.mxu0 %v782
    %1011 = vmatprep.subr.mxu0 %v907
    %1012 = vmatpush2.msra.mxu0 %v906
    %1013 = vmatprep.subr.mxu0 %v903
    %1014 = vmatpush2.msra.mxu0 %v902
    %1015 = vmatprep.subr.mxu0 %v899
    %1016 = vmatpush2.msra.mxu0 %v898
    %1017 = vmatprep.subr.mxu0 %v895
    %1018 = vmatpush2.msra.mxu0 %v894
    %1019 = vmatprep.subr.mxu0 %v891
    %1020 = vmatpush2.msra.mxu0 %v890
    %1021 = vmatprep.subr.mxu0 %v887
    %1022 = vmatpush2.msra.mxu0 %v886
    %1023 = vmatprep.subr.mxu0 %v883
    %1024 = vmatpush2.msra.mxu0 %v882
    %1025 = vmatprep.subr.mxu0 %v879
    %1026 = vmatpush2.msra.mxu0 %v878
    %1027 = vmatprep.subr.mxu0 %v875
    %1028 = vmatpush2.msra.mxu0 %v874
    %1029 = vmatprep.subr.mxu0 %v871
    %1030 = vmatpush2.msra.mxu0 %v870
    %1031 = vmatprep.subr.mxu0 %v867
    %1032 = vmatpush2.msra.mxu0 %v866
    %1033 = vmatprep.subr.mxu0 %v863
    %1034 = vmatpush2.msra.mxu0 %v862
    %1035 = vmatprep.subr.mxu0 %v859
    %1036 = vmatpush2.msra.mxu0 %v858
    %1037 = vmatprep.subr.mxu0 %v855
    %1038 = vmatpush2.msra.mxu0 %v854
    %1039 = vmatprep.subr.mxu0 %v851
    %1040 = vmatpush2.msra.mxu0 %v850
    %1041 = vmatprep.subr.mxu0 %v847
    %1042 = vmatpush2.msra.mxu0 %v846
    %1043 = vmatprep.mubr.f32.mxu0 %v779
    %1044 = vmatmul.mubr.f32.gmra.mxu0 %v778
    %v1045 = vpop.f32.mrf.mxu0
    %v1046 = vadd.f32 0.0, %v1045
    %v1047 = vpop.f32.mrf.mxu0
    %v1048 = vadd.f32 0.0, %v1047
    %1049 = vdwg.mxu0
    %s1050 = scalar_lea.vmem %s9, 6
    %v1051 = vld [vmem:[%s1050] ss:$8 sm:$0xf]
    %s1052 = scalar_lea.vmem %s9, 7
    %v1053 = vld [vmem:[%s1052] ss:$8 sm:$0xf]
    %v1054 = vrot.slane %v975, 4
    %v1055 = vadd.f32 %v975, %v1054
    %v1056 = vrot.slane %v1055, 2
    %v1057 = vadd.f32 %v1055, %v1056
    %v1058 = vrot.slane %v1057, 1
    %v1059 = vadd.f32 %v1057, %v1058
    %v1060 = vrot.slane %v977, 4
    %v1061 = vadd.f32 %v977, %v1060
    %v1062 = vrot.slane %v1061, 2
    %v1063 = vadd.f32 %v1061, %v1062
    %v1064 = vrot.slane %v1063, 1
    %v1065 = vadd.f32 %v1063, %v1064
    %v1066 = vrot.slane %v1046, 4
    %v1067 = vadd.f32 %v1046, %v1066
    %v1068 = vrot.slane %v1067, 2
    %v1069 = vadd.f32 %v1067, %v1068
    %v1070 = vrot.slane %v1069, 1
    %v1071 = vadd.f32 %v1069, %v1070
    %v1072 = vrot.slane %v1048, 4
    %v1073 = vadd.f32 %v1048, %v1072
    %v1074 = vrot.slane %v1073, 2
    %v1075 = vadd.f32 %v1073, %v1074
    %v1076 = vrot.slane %v1075, 1
    %v1077 = vadd.f32 %v1075, %v1076
    %v1078 = vmul.f32 %v1059, 0.125
    %v1079 = vmul.f32 %v1065, 0.125
    %v1080 = vmul.f32 %v1071, 0.125
    %v1081 = vmul.f32 %v1077, 0.125
    %v1082 = vmul.f32 %v975, %v975
    %v1083 = vmul.f32 %v977, %v977
    %v1084 = vmul.f32 %v1046, %v1046
    %v1085 = vmul.f32 %v1048, %v1048
    %v1086 = vrot.slane %v1082, 4
    %v1087 = vadd.f32 %v1082, %v1086
    %v1088 = vrot.slane %v1087, 2
    %v1089 = vadd.f32 %v1087, %v1088
    %v1090 = vrot.slane %v1089, 1
    %v1091 = vadd.f32 %v1089, %v1090
    %v1092 = vrot.slane %v1083, 4
    %v1093 = vadd.f32 %v1083, %v1092
    %v1094 = vrot.slane %v1093, 2
    %v1095 = vadd.f32 %v1093, %v1094
    %v1096 = vrot.slane %v1095, 1
    %v1097 = vadd.f32 %v1095, %v1096
    %v1098 = vrot.slane %v1084, 4
    %v1099 = vadd.f32 %v1084, %v1098
    %v1100 = vrot.slane %v1099, 2
    %v1101 = vadd.f32 %v1099, %v1100
    %v1102 = vrot.slane %v1101, 1
    %v1103 = vadd.f32 %v1101, %v1102
    %v1104 = vrot.slane %v1085, 4
    %v1105 = vadd.f32 %v1085, %v1104
    %v1106 = vrot.slane %v1105, 2
    %v1107 = vadd.f32 %v1105, %v1106
    %v1108 = vrot.slane %v1107, 1
    %v1109 = vadd.f32 %v1107, %v1108
    %v1110 = vmul.f32 %v1091, 0.125
    %v1111 = vmul.f32 %v1097, 0.125
    %v1112 = vmul.f32 %v1103, 0.125
    %v1113 = vmul.f32 %v1109, 0.125
    %v1114 = vmul.f32 %v1078, %v1078
    %v1115 = vmul.f32 %v1079, %v1079
    %v1116 = vmul.f32 %v1080, %v1080
    %v1117 = vmul.f32 %v1081, %v1081
    %v1118 = vsub.f32 %v1110, %v1114
    %v1119 = vsub.f32 %v1111, %v1115
    %v1120 = vsub.f32 %v1112, %v1116
    %v1121 = vsub.f32 %v1113, %v1117
    %v1122 = vmax.f32 %v1118, 0.0
    %v1123 = vmax.f32 %v1119, 0.0
    %v1124 = vmax.f32 %v1120, 0.0
    %v1125 = vmax.f32 %v1121, 0.0
    %v1126 = vadd.f32 %v1122, 1e-05
    %v1127 = vadd.f32 %v1123, 1e-05
    %v1128 = vadd.f32 %v1124, 1e-05
    %v1129 = vadd.f32 %v1125, 1e-05
    %v1130 = vrsqrt.pop %v1126
    %v1131 = vrsqrt.pop %v1127
    %v1132 = vrsqrt.pop %v1128
    %v1133 = vrsqrt.pop %v1129
    %v1138 = vcombine.low %v1130, %v1131
    %v1139 = vcombine.low %v1132, %v1133
    %v1141 = vunpack.c.l.s4 1966171168
    %v1142 = vunpack.c.0.s8 %v1141
    %v1143 = vlaneseq
    %v1144 = vshrl.u32 %v1143, 7
    %v1145 = vsub.s32 %v1142, %v1144
    %v1146 = vrot.slane %v1138, %v1145
    %v1148 = vunpack.c.l.s4 1966171168
    %v1149 = vunpack.c.0.s8 %v1148
    %v1150 = vlaneseq
    %v1151 = vshrl.u32 %v1150, 7
    %v1152 = vsub.s32 %v1149, %v1151
    %v1153 = vrot.slane %v1139, %v1152
    %v1154 = vcombine.low %v1146, %v1153
    %v1156 = vunpack.c.l.s4 1966171168
    %v1157 = vunpack.c.0.s8 %v1156
    %v1158 = vlaneseq
    %v1159 = vshrl.u32 %v1158, 7
    %v1160 = vsub.s32 %v1157, %v1159
    %v1161 = vrot.slane %v1154, %v1160
    %v1163 = vmul.f32 %v1051, %v1161
    %v1165 = vlaneseq
    %v1166 = vshrl.u32 %v1165, 7
    %v1167 = vsub.s32 0, %v1166
    %v1168 = vrot.slane %v1163, %v1167
    %v1169 = vlaneseq
    %v1170 = vshrl.u32 %v1169, 7
    %v1171 = vsub.s32 1, %v1170
    %v1172 = vrot.slane %v1163, %v1171
    %v1173 = vlaneseq
    %v1174 = vshrl.u32 %v1173, 7
    %v1175 = vsub.s32 2, %v1174
    %v1176 = vrot.slane %v1163, %v1175
    %v1177 = vlaneseq
    %v1178 = vshrl.u32 %v1177, 7
    %v1179 = vsub.s32 3, %v1178
    %v1180 = vrot.slane %v1163, %v1179
    %v1185 = vmul.f32 %v975, %v1168
    %v1186 = vmul.f32 %v977, %v1172
    %v1187 = vmul.f32 %v1046, %v1176
    %v1188 = vmul.f32 %v1048, %v1180
    %v1189 = vmul.f32 %v1078, %v1168
    %v1190 = vmul.f32 %v1079, %v1172
    %v1191 = vmul.f32 %v1080, %v1176
    %v1192 = vmul.f32 %v1081, %v1180
    %v1197 = vcombine.low %v1189, %v1190
    %v1198 = vcombine.low %v1191, %v1192
    %v1200 = vunpack.c.l.s4 1966171168
    %v1201 = vunpack.c.0.s8 %v1200
    %v1202 = vlaneseq
    %v1203 = vshrl.u32 %v1202, 7
    %v1204 = vsub.s32 %v1201, %v1203
    %v1205 = vrot.slane %v1197, %v1204
    %v1207 = vunpack.c.l.s4 1966171168
    %v1208 = vunpack.c.0.s8 %v1207
    %v1209 = vlaneseq
    %v1210 = vshrl.u32 %v1209, 7
    %v1211 = vsub.s32 %v1208, %v1210
    %v1212 = vrot.slane %v1198, %v1211
    %v1213 = vcombine.low %v1205, %v1212
    %v1215 = vunpack.c.l.s4 1966171168
    %v1216 = vunpack.c.0.s8 %v1215
    %v1217 = vlaneseq
    %v1218 = vshrl.u32 %v1217, 7
    %v1219 = vsub.s32 %v1216, %v1218
    %v1220 = vrot.slane %v1213, %v1219
    %v1222 = vsub.f32 %v1053, %v1220
    %v1224 = vlaneseq
    %v1225 = vshrl.u32 %v1224, 7
    %v1226 = vsub.s32 0, %v1225
    %v1227 = vrot.slane %v1222, %v1226
    %v1228 = vlaneseq
    %v1229 = vshrl.u32 %v1228, 7
    %v1230 = vsub.s32 1, %v1229
    %v1231 = vrot.slane %v1222, %v1230
    %v1232 = vlaneseq
    %v1233 = vshrl.u32 %v1232, 7
    %v1234 = vsub.s32 2, %v1233
    %v1235 = vrot.slane %v1222, %v1234
    %v1236 = vlaneseq
    %v1237 = vshrl.u32 %v1236, 7
    %v1238 = vsub.s32 3, %v1237
    %v1239 = vrot.slane %v1222, %v1238
    %v1244 = vadd.f32 %v1185, %v1227
    %v1245 = vadd.f32 %v1186, %v1231
    %v1246 = vadd.f32 %v1187, %v1235
    %v1247 = vadd.f32 %v1188, %v1239
    %v1248 = vmax.f32 %v1244, 0.0
    %v1249 = vmax.f32 %v1245, 0.0
    %v1250 = vmax.f32 %v1246, 0.0
    %v1251 = vmax.f32 %v1247, 0.0
    %v1252 = vld [vmem:[#allocation10] sm:$0xff]
    %v1253 = vld [vmem:[#allocation10 + $0x8] sm:$0xff]
    %v1254 = vld [vmem:[#allocation10 + $0x10] sm:$0xff]
    %v1255 = vld [vmem:[#allocation10 + $0x18] sm:$0xff]
    %v1256 = vld [vmem:[#allocation10 + $0x20] sm:$0xff]
    %v1257 = vld [vmem:[#allocation10 + $0x28] sm:$0xff]
    %v1258 = vld [vmem:[#allocation10 + $0x30] sm:$0xff]
    %v1259 = vld [vmem:[#allocation10 + $0x38] sm:$0xff]
    %v1260 = vld [vmem:[#allocation10 + $0x40] sm:$0xff]
    %v1261 = vld [vmem:[#allocation10 + $0x48] sm:$0xff]
    %v1262 = vld [vmem:[#allocation10 + $0x50] sm:$0xff]
    %v1263 = vld [vmem:[#allocation10 + $0x58] sm:$0xff]
    %v1264 = vld [vmem:[#allocation10 + $0x60] sm:$0xff]
    %v1265 = vld [vmem:[#allocation10 + $0x68] sm:$0xff]
    %v1266 = vld [vmem:[#allocation10 + $0x70] sm:$0xff]
    %v1267 = vld [vmem:[#allocation10 + $0x78] sm:$0xff]
    %v1268 = vld [vmem:[#allocation10 + $0x80] sm:$0xff]
    %v1269 = vld [vmem:[#allocation10 + $0x88] sm:$0xff]
    %v1270 = vld [vmem:[#allocation10 + $0x90] sm:$0xff]
    %v1271 = vld [vmem:[#allocation10 + $0x98] sm:$0xff]
    %v1272 = vld [vmem:[#allocation10 + $0xa0] sm:$0xff]
    %v1273 = vld [vmem:[#allocation10 + $0xa8] sm:$0xff]
    %v1274 = vld [vmem:[#allocation10 + $0xb0] sm:$0xff]
    %v1275 = vld [vmem:[#allocation10 + $0xb8] sm:$0xff]
    %v1276 = vld [vmem:[#allocation10 + $0xc0] sm:$0xff]
    %v1277 = vld [vmem:[#allocation10 + $0xc8] sm:$0xff]
    %v1278 = vld [vmem:[#allocation10 + $0xd0] sm:$0xff]
    %v1279 = vld [vmem:[#allocation10 + $0xd8] sm:$0xff]
    %v1280 = vld [vmem:[#allocation10 + $0xe0] sm:$0xff]
    %v1281 = vld [vmem:[#allocation10 + $0xe8] sm:$0xff]
    %v1282 = vld [vmem:[#allocation10 + $0xf0] sm:$0xff]
    %v1283 = vld [vmem:[#allocation10 + $0xf8] sm:$0xff]
    %v1284 = vld [vmem:[#allocation10 + $0x100] sm:$0xff]
    %v1285 = vld [vmem:[#allocation10 + $0x108] sm:$0xff]
    %v1286 = vld [vmem:[#allocation10 + $0x110] sm:$0xff]
    %v1287 = vld [vmem:[#allocation10 + $0x118] sm:$0xff]
    %v1288 = vld [vmem:[#allocation10 + $0x120] sm:$0xff]
    %v1289 = vld [vmem:[#allocation10 + $0x128] sm:$0xff]
    %v1290 = vld [vmem:[#allocation10 + $0x130] sm:$0xff]
    %v1291 = vld [vmem:[#allocation10 + $0x138] sm:$0xff]
    %v1292 = vld [vmem:[#allocation10 + $0x140] sm:$0xff]
    %v1293 = vld [vmem:[#allocation10 + $0x148] sm:$0xff]
    %v1294 = vld [vmem:[#allocation10 + $0x150] sm:$0xff]
    %v1295 = vld [vmem:[#allocation10 + $0x158] sm:$0xff]
    %v1296 = vld [vmem:[#allocation10 + $0x160] sm:$0xff]
    %v1297 = vld [vmem:[#allocation10 + $0x168] sm:$0xff]
    %v1298 = vld [vmem:[#allocation10 + $0x170] sm:$0xff]
    %v1299 = vld [vmem:[#allocation10 + $0x178] sm:$0xff]
    %v1300 = vld [vmem:[#allocation10 + $0x180] sm:$0xff]
    %v1301 = vld [vmem:[#allocation10 + $0x188] sm:$0xff]
    %v1302 = vld [vmem:[#allocation10 + $0x190] sm:$0xff]
    %v1303 = vld [vmem:[#allocation10 + $0x198] sm:$0xff]
    %v1304 = vld [vmem:[#allocation10 + $0x1a0] sm:$0xff]
    %v1305 = vld [vmem:[#allocation10 + $0x1a8] sm:$0xff]
    %v1306 = vld [vmem:[#allocation10 + $0x1b0] sm:$0xff]
    %v1307 = vld [vmem:[#allocation10 + $0x1b8] sm:$0xff]
    %v1308 = vld [vmem:[#allocation10 + $0x1c0] sm:$0xff]
    %v1309 = vld [vmem:[#allocation10 + $0x1c8] sm:$0xff]
    %v1310 = vld [vmem:[#allocation10 + $0x1d0] sm:$0xff]
    %v1311 = vld [vmem:[#allocation10 + $0x1d8] sm:$0xff]
    %v1312 = vld [vmem:[#allocation10 + $0x1e0] sm:$0xff]
    %v1313 = vld [vmem:[#allocation10 + $0x1e8] sm:$0xff]
    %v1314 = vld [vmem:[#allocation10 + $0x1f0] sm:$0xff]
    %v1315 = vld [vmem:[#allocation10 + $0x1f8] sm:$0xff]
    %v1316 = vld [vmem:[#allocation10 + $0x200] sm:$0xff]
    %v1317 = vld [vmem:[#allocation10 + $0x208] sm:$0xff]
    %v1318 = vld [vmem:[#allocation10 + $0x210] sm:$0xff]
    %v1319 = vld [vmem:[#allocation10 + $0x218] sm:$0xff]
    %v1320 = vld [vmem:[#allocation10 + $0x220] sm:$0xff]
    %v1321 = vld [vmem:[#allocation10 + $0x228] sm:$0xff]
    %v1322 = vld [vmem:[#allocation10 + $0x230] sm:$0xff]
    %v1323 = vld [vmem:[#allocation10 + $0x238] sm:$0xff]
    %v1324 = vld [vmem:[#allocation10 + $0x240] sm:$0xff]
    %v1325 = vld [vmem:[#allocation10 + $0x248] sm:$0xff]
    %v1326 = vld [vmem:[#allocation10 + $0x250] sm:$0xff]
    %v1327 = vld [vmem:[#allocation10 + $0x258] sm:$0xff]
    %v1328 = vld [vmem:[#allocation10 + $0x260] sm:$0xff]
    %v1329 = vld [vmem:[#allocation10 + $0x268] sm:$0xff]
    %v1330 = vld [vmem:[#allocation10 + $0x270] sm:$0xff]
    %v1331 = vld [vmem:[#allocation10 + $0x278] sm:$0xff]
    %v1332 = vld [vmem:[#allocation10 + $0x280] sm:$0xff]
    %v1333 = vld [vmem:[#allocation10 + $0x288] sm:$0xff]
    %v1334 = vld [vmem:[#allocation10 + $0x290] sm:$0xff]
    %v1335 = vld [vmem:[#allocation10 + $0x298] sm:$0xff]
    %v1336 = vld [vmem:[#allocation10 + $0x2a0] sm:$0xff]
    %v1337 = vld [vmem:[#allocation10 + $0x2a8] sm:$0xff]
    %v1338 = vld [vmem:[#allocation10 + $0x2b0] sm:$0xff]
    %v1339 = vld [vmem:[#allocation10 + $0x2b8] sm:$0xff]
    %v1340 = vld [vmem:[#allocation10 + $0x2c0] sm:$0xff]
    %v1341 = vld [vmem:[#allocation10 + $0x2c8] sm:$0xff]
    %v1342 = vld [vmem:[#allocation10 + $0x2d0] sm:$0xff]
    %v1343 = vld [vmem:[#allocation10 + $0x2d8] sm:$0xff]
    %v1344 = vld [vmem:[#allocation10 + $0x2e0] sm:$0xff]
    %v1345 = vld [vmem:[#allocation10 + $0x2e8] sm:$0xff]
    %v1346 = vld [vmem:[#allocation10 + $0x2f0] sm:$0xff]
    %v1347 = vld [vmem:[#allocation10 + $0x2f8] sm:$0xff]
    %v1348 = vld [vmem:[#allocation10 + $0x300] sm:$0xff]
    %v1349 = vld [vmem:[#allocation10 + $0x308] sm:$0xff]
    %v1350 = vld [vmem:[#allocation10 + $0x310] sm:$0xff]
    %v1351 = vld [vmem:[#allocation10 + $0x318] sm:$0xff]
    %v1352 = vld [vmem:[#allocation10 + $0x320] sm:$0xff]
    %v1353 = vld [vmem:[#allocation10 + $0x328] sm:$0xff]
    %v1354 = vld [vmem:[#allocation10 + $0x330] sm:$0xff]
    %v1355 = vld [vmem:[#allocation10 + $0x338] sm:$0xff]
    %v1356 = vld [vmem:[#allocation10 + $0x340] sm:$0xff]
    %v1357 = vld [vmem:[#allocation10 + $0x348] sm:$0xff]
    %v1358 = vld [vmem:[#allocation10 + $0x350] sm:$0xff]
    %v1359 = vld [vmem:[#allocation10 + $0x358] sm:$0xff]
    %v1360 = vld [vmem:[#allocation10 + $0x360] sm:$0xff]
    %v1361 = vld [vmem:[#allocation10 + $0x368] sm:$0xff]
    %v1362 = vld [vmem:[#allocation10 + $0x370] sm:$0xff]
    %v1363 = vld [vmem:[#allocation10 + $0x378] sm:$0xff]
    %v1364 = vld [vmem:[#allocation10 + $0x380] sm:$0xff]
    %v1365 = vld [vmem:[#allocation10 + $0x388] sm:$0xff]
    %v1366 = vld [vmem:[#allocation10 + $0x390] sm:$0xff]
    %v1367 = vld [vmem:[#allocation10 + $0x398] sm:$0xff]
    %v1368 = vld [vmem:[#allocation10 + $0x3a0] sm:$0xff]
    %v1369 = vld [vmem:[#allocation10 + $0x3a8] sm:$0xff]
    %v1370 = vld [vmem:[#allocation10 + $0x3b0] sm:$0xff]
    %v1371 = vld [vmem:[#allocation10 + $0x3b8] sm:$0xff]
    %v1372 = vld [vmem:[#allocation10 + $0x3c0] sm:$0xff]
    %v1373 = vld [vmem:[#allocation10 + $0x3c8] sm:$0xff]
    %v1374 = vld [vmem:[#allocation10 + $0x3d0] sm:$0xff]
    %v1375 = vld [vmem:[#allocation10 + $0x3d8] sm:$0xff]
    %v1376 = vld [vmem:[#allocation10 + $0x3e0] sm:$0xff]
    %v1377 = vld [vmem:[#allocation10 + $0x3e8] sm:$0xff]
    %v1378 = vld [vmem:[#allocation10 + $0x3f0] sm:$0xff]
    %v1379 = vld [vmem:[#allocation10 + $0x3f8] sm:$0xff]
    %1380 = vmatprep.subr.mxu0 %v1283
    %1381 = vmatpush1.msra.mxu0 %v1282
    %1382 = vmatprep.subr.mxu0 %v1281
    %1383 = vmatpush1.msra.mxu0 %v1280
    %1384 = vmatprep.subr.mxu0 %v1279
    %1385 = vmatpush1.msra.mxu0 %v1278
    %1386 = vmatprep.subr.mxu0 %v1277
    %1387 = vmatpush1.msra.mxu0 %v1276
    %1388 = vmatprep.subr.mxu0 %v1275
    %1389 = vmatpush1.msra.mxu0 %v1274
    %1390 = vmatprep.subr.mxu0 %v1273
    %1391 = vmatpush1.msra.mxu0 %v1272
    %1392 = vmatprep.subr.mxu0 %v1271
    %1393 = vmatpush1.msra.mxu0 %v1270
    %1394 = vmatprep.subr.mxu0 %v1269
    %1395 = vmatpush1.msra.mxu0 %v1268
    %1396 = vmatprep.subr.mxu0 %v1267
    %1397 = vmatpush1.msra.mxu0 %v1266
    %1398 = vmatprep.subr.mxu0 %v1265
    %1399 = vmatpush1.msra.mxu0 %v1264
    %1400 = vmatprep.subr.mxu0 %v1263
    %1401 = vmatpush1.msra.mxu0 %v1262
    %1402 = vmatprep.subr.mxu0 %v1261
    %1403 = vmatpush1.msra.mxu0 %v1260
    %1404 = vmatprep.subr.mxu0 %v1259
    %1405 = vmatpush1.msra.mxu0 %v1258
    %1406 = vmatprep.subr.mxu0 %v1257
    %1407 = vmatpush1.msra.mxu0 %v1256
    %1408 = vmatprep.subr.mxu0 %v1255
    %1409 = vmatpush1.msra.mxu0 %v1254
    %1410 = vmatprep.subr.mxu0 %v1253
    %1411 = vmatpush1.msra.mxu0 %v1252
    %1412 = vmatprep.subr.mxu0 %v1315
    %1413 = vmatpush2.msra.mxu0 %v1314
    %1414 = vmatprep.subr.mxu0 %v1313
    %1415 = vmatpush2.msra.mxu0 %v1312
    %1416 = vmatprep.subr.mxu0 %v1311
    %1417 = vmatpush2.msra.mxu0 %v1310
    %1418 = vmatprep.subr.mxu0 %v1309
    %1419 = vmatpush2.msra.mxu0 %v1308
    %1420 = vmatprep.subr.mxu0 %v1307
    %1421 = vmatpush2.msra.mxu0 %v1306
    %1422 = vmatprep.subr.mxu0 %v1305
    %1423 = vmatpush2.msra.mxu0 %v1304
    %1424 = vmatprep.subr.mxu0 %v1303
    %1425 = vmatpush2.msra.mxu0 %v1302
    %1426 = vmatprep.subr.mxu0 %v1301
    %1427 = vmatpush2.msra.mxu0 %v1300
    %1428 = vmatprep.subr.mxu0 %v1299
    %1429 = vmatpush2.msra.mxu0 %v1298
    %1430 = vmatprep.subr.mxu0 %v1297
    %1431 = vmatpush2.msra.mxu0 %v1296
    %1432 = vmatprep.subr.mxu0 %v1295
    %1433 = vmatpush2.msra.mxu0 %v1294
    %1434 = vmatprep.subr.mxu0 %v1293
    %1435 = vmatpush2.msra.mxu0 %v1292
    %1436 = vmatprep.subr.mxu0 %v1291
    %1437 = vmatpush2.msra.mxu0 %v1290
    %1438 = vmatprep.subr.mxu0 %v1289
    %1439 = vmatpush2.msra.mxu0 %v1288
    %1440 = vmatprep.subr.mxu0 %v1287
    %1441 = vmatpush2.msra.mxu0 %v1286
    %1442 = vmatprep.subr.mxu0 %v1285
    %1443 = vmatpush2.msra.mxu0 %v1284
    %1444 = vmatprep.mubr.f32.mxu0 %v1249
    %1445 = vmatmul.mubr.f32.gmra.mxu0 %v1248
    %v1446 = vpop.f32.mrf.mxu0
    %v1447 = vadd.f32 0.0, %v1446
    %v1448 = vpop.f32.mrf.mxu0
    %v1449 = vadd.f32 0.0, %v1448
    %1450 = vdwg.mxu0
    %1451 = vmatprep.subr.mxu0 %v1347
    %1452 = vmatpush1.msra.mxu0 %v1346
    %1453 = vmatprep.subr.mxu0 %v1345
    %1454 = vmatpush1.msra.mxu0 %v1344
    %1455 = vmatprep.subr.mxu0 %v1343
    %1456 = vmatpush1.msra.mxu0 %v1342
    %1457 = vmatprep.subr.mxu0 %v1341
    %1458 = vmatpush1.msra.mxu0 %v1340
    %1459 = vmatprep.subr.mxu0 %v1339
    %1460 = vmatpush1.msra.mxu0 %v1338
    %1461 = vmatprep.subr.mxu0 %v1337
    %1462 = vmatpush1.msra.mxu0 %v1336
    %1463 = vmatprep.subr.mxu0 %v1335
    %1464 = vmatpush1.msra.mxu0 %v1334
    %1465 = vmatprep.subr.mxu0 %v1333
    %1466 = vmatpush1.msra.mxu0 %v1332
    %1467 = vmatprep.subr.mxu0 %v1331
    %1468 = vmatpush1.msra.mxu0 %v1330
    %1469 = vmatprep.subr.mxu0 %v1329
    %1470 = vmatpush1.msra.mxu0 %v1328
    %1471 = vmatprep.subr.mxu0 %v1327
    %1472 = vmatpush1.msra.mxu0 %v1326
    %1473 = vmatprep.subr.mxu0 %v1325
    %1474 = vmatpush1.msra.mxu0 %v1324
    %1475 = vmatprep.subr.mxu0 %v1323
    %1476 = vmatpush1.msra.mxu0 %v1322
    %1477 = vmatprep.subr.mxu0 %v1321
    %1478 = vmatpush1.msra.mxu0 %v1320
    %1479 = vmatprep.subr.mxu0 %v1319
    %1480 = vmatpush1.msra.mxu0 %v1318
    %1481 = vmatprep.subr.mxu0 %v1317
    %1482 = vmatpush1.msra.mxu0 %v1316
    %1483 = vmatprep.subr.mxu0 %v1379
    %1484 = vmatpush2.msra.mxu0 %v1378
    %1485 = vmatprep.subr.mxu0 %v1377
    %1486 = vmatpush2.msra.mxu0 %v1376
    %1487 = vmatprep.subr.mxu0 %v1375
    %1488 = vmatpush2.msra.mxu0 %v1374
    %1489 = vmatprep.subr.mxu0 %v1373
    %1490 = vmatpush2.msra.mxu0 %v1372
    %1491 = vmatprep.subr.mxu0 %v1371
    %1492 = vmatpush2.msra.mxu0 %v1370
    %1493 = vmatprep.subr.mxu0 %v1369
    %1494 = vmatpush2.msra.mxu0 %v1368
    %1495 = vmatprep.subr.mxu0 %v1367
    %1496 = vmatpush2.msra.mxu0 %v1366
    %1497 = vmatprep.subr.mxu0 %v1365
    %1498 = vmatpush2.msra.mxu0 %v1364
    %1499 = vmatprep.subr.mxu0 %v1363
    %1500 = vmatpush2.msra.mxu0 %v1362
    %1501 = vmatprep.subr.mxu0 %v1361
    %1502 = vmatpush2.msra.mxu0 %v1360
    %1503 = vmatprep.subr.mxu0 %v1359
    %1504 = vmatpush2.msra.mxu0 %v1358
    %1505 = vmatprep.subr.mxu0 %v1357
    %1506 = vmatpush2.msra.mxu0 %v1356
    %1507 = vmatprep.subr.mxu0 %v1355
    %1508 = vmatpush2.msra.mxu0 %v1354
    %1509 = vmatprep.subr.mxu0 %v1353
    %1510 = vmatpush2.msra.mxu0 %v1352
    %1511 = vmatprep.subr.mxu0 %v1351
    %1512 = vmatpush2.msra.mxu0 %v1350
    %1513 = vmatprep.subr.mxu0 %v1349
    %1514 = vmatpush2.msra.mxu0 %v1348
    %1515 = vmatprep.mubr.f32.mxu0 %v1251
    %1516 = vmatmul.mubr.f32.gmra.mxu0 %v1250
    %v1517 = vpop.f32.mrf.mxu0
    %v1518 = vadd.f32 %v1447, %v1517
    %v1519 = vpop.f32.mrf.mxu0
    %v1520 = vadd.f32 %v1449, %v1519
    %1521 = vdwg.mxu0
    %s1522 = scalar_lea.vmem %s9, 32
    %v1523 = vld [vmem:[%s1522] ss:$8 sm:$0x3]
    %s1524 = scalar_lea.vmem %s9, 33
    %v1525 = vld [vmem:[%s1524] ss:$8 sm:$0x3]
    %v1526 = vrot.slane %v1518, 4
    %v1527 = vadd.f32 %v1518, %v1526
    %v1528 = vrot.slane %v1527, 2
    %v1529 = vadd.f32 %v1527, %v1528
    %v1530 = vrot.slane %v1529, 1
    %v1531 = vadd.f32 %v1529, %v1530
    %v1532 = vrot.slane %v1520, 4
    %v1533 = vadd.f32 %v1520, %v1532
    %v1534 = vrot.slane %v1533, 2
    %v1535 = vadd.f32 %v1533, %v1534
    %v1536 = vrot.slane %v1535, 1
    %v1537 = vadd.f32 %v1535, %v1536
    %v1538 = vmul.f32 %v1531, 0.125
    %v1539 = vmul.f32 %v1537, 0.125
    %v1540 = vmul.f32 %v1518, %v1518
    %v1541 = vmul.f32 %v1520, %v1520
    %v1542 = vrot.slane %v1540, 4
    %v1543 = vadd.f32 %v1540, %v1542
    %v1544 = vrot.slane %v1543, 2
    %v1545 = vadd.f32 %v1543, %v1544
    %v1546 = vrot.slane %v1545, 1
    %v1547 = vadd.f32 %v1545, %v1546
    %v1548 = vrot.slane %v1541, 4
    %v1549 = vadd.f32 %v1541, %v1548
    %v1550 = vrot.slane %v1549, 2
    %v1551 = vadd.f32 %v1549, %v1550
    %v1552 = vrot.slane %v1551, 1
    %v1553 = vadd.f32 %v1551, %v1552
    %v1554 = vmul.f32 %v1547, 0.125
    %v1555 = vmul.f32 %v1553, 0.125
    %v1556 = vmul.f32 %v1538, %v1538
    %v1557 = vmul.f32 %v1539, %v1539
    %v1558 = vsub.f32 %v1554, %v1556
    %v1559 = vsub.f32 %v1555, %v1557
    %v1560 = vmax.f32 %v1558, 0.0
    %v1561 = vmax.f32 %v1559, 0.0
    %v1562 = vadd.f32 %v1560, 1e-05
    %v1563 = vadd.f32 %v1561, 1e-05
    %v1564 = vrsqrt.pop %v1562
    %v1565 = vrsqrt.pop %v1563
    %v1568 = vcombine.low %v1564, %v1565
    %v1570 = vunpack.c.l.s4 1966171168
    %v1571 = vunpack.c.0.s8 %v1570
    %v1572 = vlaneseq
    %v1573 = vshrl.u32 %v1572, 7
    %v1574 = vsub.s32 %v1571, %v1573
    %v1575 = vrot.slane %v1568, %v1574
    %v1577 = vunpack.c.l.s4 1966171168
    %v1578 = vunpack.c.0.s8 %v1577
    %v1579 = vlaneseq
    %v1580 = vshrl.u32 %v1579, 7
    %v1581 = vsub.s32 %v1578, %v1580
    %v1582 = vrot.slane %v1575, %v1581
    %v1584 = vmul.f32 %v1523, %v1582
    %v1586 = vlaneseq
    %v1587 = vshrl.u32 %v1586, 7
    %v1588 = vsub.s32 0, %v1587
    %v1589 = vrot.slane %v1584, %v1588
    %v1590 = vlaneseq
    %v1591 = vshrl.u32 %v1590, 7
    %v1592 = vsub.s32 1, %v1591
    %v1593 = vrot.slane %v1584, %v1592
    %v1596 = vmul.f32 %v1518, %v1589
    %v1597 = vmul.f32 %v1520, %v1593
    %v1598 = vmul.f32 %v1538, %v1589
    %v1599 = vmul.f32 %v1539, %v1593
    %v1602 = vcombine.low %v1598, %v1599
    %v1604 = vunpack.c.l.s4 1966171168
    %v1605 = vunpack.c.0.s8 %v1604
    %v1606 = vlaneseq
    %v1607 = vshrl.u32 %v1606, 7
    %v1608 = vsub.s32 %v1605, %v1607
    %v1609 = vrot.slane %v1602, %v1608
    %v1611 = vunpack.c.l.s4 1966171168
    %v1612 = vunpack.c.0.s8 %v1611
    %v1613 = vlaneseq
    %v1614 = vshrl.u32 %v1613, 7
    %v1615 = vsub.s32 %v1612, %v1614
    %v1616 = vrot.slane %v1609, %v1615
    %v1618 = vsub.f32 %v1525, %v1616
    %v1620 = vlaneseq
    %v1621 = vshrl.u32 %v1620, 7
    %v1622 = vsub.s32 0, %v1621
    %v1623 = vrot.slane %v1618, %v1622
    %v1624 = vlaneseq
    %v1625 = vshrl.u32 %v1624, 7
    %v1626 = vsub.s32 1, %v1625
    %v1627 = vrot.slane %v1618, %v1626
    %v1630 = vadd.f32 %v1596, %v1623
    %v1631 = vadd.f32 %v1597, %v1627
    %v1632 = vmax.f32 %v1630, 0.0
    %v1633 = vmax.f32 %v1631, 0.0
    %v1634 = vld [vmem:[#allocation11] sm:$0xff]
    %v1635 = vld [vmem:[#allocation11 + $0x8] sm:$0xff]
    %v1636 = vld [vmem:[#allocation11 + $0x10] sm:$0xff]
    %v1637 = vld [vmem:[#allocation11 + $0x18] sm:$0xff]
    %v1638 = vld [vmem:[#allocation11 + $0x20] sm:$0xff]
    %v1639 = vld [vmem:[#allocation11 + $0x28] sm:$0xff]
    %v1640 = vld [vmem:[#allocation11 + $0x30] sm:$0xff]
    %v1641 = vld [vmem:[#allocation11 + $0x38] sm:$0xff]
    %v1642 = vld [vmem:[#allocation11 + $0x40] sm:$0xff]
    %v1643 = vld [vmem:[#allocation11 + $0x48] sm:$0xff]
    %v1644 = vld [vmem:[#allocation11 + $0x50] sm:$0xff]
    %v1645 = vld [vmem:[#allocation11 + $0x58] sm:$0xff]
    %v1646 = vld [vmem:[#allocation11 + $0x60] sm:$0xff]
    %v1647 = vld [vmem:[#allocation11 + $0x68] sm:$0xff]
    %v1648 = vld [vmem:[#allocation11 + $0x70] sm:$0xff]
    %v1649 = vld [vmem:[#allocation11 + $0x78] sm:$0xff]
    %v1650 = vld [vmem:[#allocation11 + $0x80] sm:$0xff]
    %v1651 = vld [vmem:[#allocation11 + $0x88] sm:$0xff]
    %v1652 = vld [vmem:[#allocation11 + $0x90] sm:$0xff]
    %v1653 = vld [vmem:[#allocation11 + $0x98] sm:$0xff]
    %v1654 = vld [vmem:[#allocation11 + $0xa0] sm:$0xff]
    %v1655 = vld [vmem:[#allocation11 + $0xa8] sm:$0xff]
    %v1656 = vld [vmem:[#allocation11 + $0xb0] sm:$0xff]
    %v1657 = vld [vmem:[#allocation11 + $0xb8] sm:$0xff]
    %v1658 = vld [vmem:[#allocation11 + $0xc0] sm:$0xff]
    %v1659 = vld [vmem:[#allocation11 + $0xc8] sm:$0xff]
    %v1660 = vld [vmem:[#allocation11 + $0xd0] sm:$0xff]
    %v1661 = vld [vmem:[#allocation11 + $0xd8] sm:$0xff]
    %v1662 = vld [vmem:[#allocation11 + $0xe0] sm:$0xff]
    %v1663 = vld [vmem:[#allocation11 + $0xe8] sm:$0xff]
    %v1664 = vld [vmem:[#allocation11 + $0xf0] sm:$0xff]
    %v1665 = vld [vmem:[#allocation11 + $0xf8] sm:$0xff]
    %1666 = vmatprep.subr.mxu0 0.0
    %1667 = vmatpush1.msra.mxu0 %v1649
    %1668 = vmatprep.subr.mxu0 0.0
    %1669 = vmatpush1.msra.mxu0 %v1648
    %1670 = vmatprep.subr.mxu0 0.0
    %1671 = vmatpush1.msra.mxu0 %v1647
    %1672 = vmatprep.subr.mxu0 0.0
    %1673 = vmatpush1.msra.mxu0 %v1646
    %1674 = vmatprep.subr.mxu0 0.0
    %1675 = vmatpush1.msra.mxu0 %v1645
    %1676 = vmatprep.subr.mxu0 0.0
    %1677 = vmatpush1.msra.mxu0 %v1644
    %1678 = vmatprep.subr.mxu0 0.0
    %1679 = vmatpush1.msra.mxu0 %v1643
    %1680 = vmatprep.subr.mxu0 0.0
    %1681 = vmatpush1.msra.mxu0 %v1642
    %1682 = vmatprep.subr.mxu0 0.0
    %1683 = vmatpush1.msra.mxu0 %v1641
    %1684 = vmatprep.subr.mxu0 0.0
    %1685 = vmatpush1.msra.mxu0 %v1640
    %1686 = vmatprep.subr.mxu0 0.0
    %1687 = vmatpush1.msra.mxu0 %v1639
    %1688 = vmatprep.subr.mxu0 0.0
    %1689 = vmatpush1.msra.mxu0 %v1638
    %1690 = vmatprep.subr.mxu0 0.0
    %1691 = vmatpush1.msra.mxu0 %v1637
    %1692 = vmatprep.subr.mxu0 0.0
    %1693 = vmatpush1.msra.mxu0 %v1636
    %1694 = vmatprep.subr.mxu0 0.0
    %1695 = vmatpush1.msra.mxu0 %v1635
    %1696 = vmatprep.subr.mxu0 0.0
    %1697 = vmatpush1.msra.mxu0 %v1634
    %1698 = vmatprep.subr.mxu0 0.0
    %1699 = vmatpush2.msra.mxu0 %v1665
    %1700 = vmatprep.subr.mxu0 0.0
    %1701 = vmatpush2.msra.mxu0 %v1664
    %1702 = vmatprep.subr.mxu0 0.0
    %1703 = vmatpush2.msra.mxu0 %v1663
    %1704 = vmatprep.subr.mxu0 0.0
    %1705 = vmatpush2.msra.mxu0 %v1662
    %1706 = vmatprep.subr.mxu0 0.0
    %1707 = vmatpush2.msra.mxu0 %v1661
    %1708 = vmatprep.subr.mxu0 0.0
    %1709 = vmatpush2.msra.mxu0 %v1660
    %1710 = vmatprep.subr.mxu0 0.0
    %1711 = vmatpush2.msra.mxu0 %v1659
    %1712 = vmatprep.subr.mxu0 0.0
    %1713 = vmatpush2.msra.mxu0 %v1658
    %1714 = vmatprep.subr.mxu0 0.0
    %1715 = vmatpush2.msra.mxu0 %v1657
    %1716 = vmatprep.subr.mxu0 0.0
    %1717 = vmatpush2.msra.mxu0 %v1656
    %1718 = vmatprep.subr.mxu0 0.0
    %1719 = vmatpush2.msra.mxu0 %v1655
    %1720 = vmatprep.subr.mxu0 0.0
    %1721 = vmatpush2.msra.mxu0 %v1654
    %1722 = vmatprep.subr.mxu0 0.0
    %1723 = vmatpush2.msra.mxu0 %v1653
    %1724 = vmatprep.subr.mxu0 0.0
    %1725 = vmatpush2.msra.mxu0 %v1652
    %1726 = vmatprep.subr.mxu0 0.0
    %1727 = vmatpush2.msra.mxu0 %v1651
    %1728 = vmatprep.subr.mxu0 0.0
    %1729 = vmatpush2.msra.mxu0 %v1650
    %1730 = vmatprep.mubr.f32.mxu0 %v1633
    %1731 = vmatmul.mubr.f32.gmra.mxu0 %v1632
    %v1732 = vpop.f32.mrf.mxu0
    %v1733 = vadd.f32 0.0, %v1732
    %v1734 = vpop.f32.mrf.mxu0
    %1735 = vdwg.mxu0
    %v1736 = vld [vmem:[%s9 + $0x22] ss:$0 sm:$0xff]
    %v1737 = vld [vmem:[%s9 + $0x23] ss:$0 sm:$0xff]
    %v1738 = vrot.slane %v1733, 4
    %v1739 = vadd.f32 %v1733, %v1738
    %v1740 = vrot.slane %v1739, 2
    %v1741 = vadd.f32 %v1739, %v1740
    %v1742 = vrot.slane %v1741, 1
    %v1743 = vadd.f32 %v1741, %v1742
    %v1744 = vmul.f32 %v1743, 0.125
    %v1745 = vmul.f32 %v1733, %v1733
    %v1746 = vrot.slane %v1745, 4
    %v1747 = vadd.f32 %v1745, %v1746
    %v1748 = vrot.slane %v1747, 2
    %v1749 = vadd.f32 %v1747, %v1748
    %v1750 = vrot.slane %v1749, 1
    %v1751 = vadd.f32 %v1749, %v1750
    %v1752 = vmul.f32 %v1751, 0.125
    %v1753 = vmul.f32 %v1744, %v1744
    %v1754 = vsub.f32 %v1752, %v1753
    %v1755 = vmax.f32 %v1754, 0.0
    %v1756 = vadd.f32 %v1755, 1e-05
    %v1757 = vrsqrt.pop %v1756
    %v1758 = vmul.f32 %v1736, %v1757
    %v1759 = vmul.f32 %v1733, %v1758
    %v1760 = vmul.f32 %v1744, %v1758
    %v1761 = vsub.f32 %v1737, %v1760
    %v1762 = vadd.f32 %v1759, %v1761
    %v1763 = vmax.f32 %v1762, 0.0
    %v1764 = vld [vmem:[%s7] sm:$0xff]
    %v1765 = vld [vmem:[%s7 + $0x8] sm:$0xff]
    %v1766 = vld [vmem:[%s7 + $0x10] sm:$0xff]
    %v1767 = vld [vmem:[%s7 + $0x18] sm:$0xff]
    %v1768 = vld [vmem:[%s7 + $0x20] sm:$0xff]
    %v1769 = vld [vmem:[%s7 + $0x28] sm:$0xff]
    %v1770 = vld [vmem:[%s7 + $0x30] sm:$0xff]
    %v1771 = vld [vmem:[%s7 + $0x38] sm:$0xff]
    %v1772 = vld [vmem:[%s7 + $0x40] sm:$0xff]
    %v1773 = vld [vmem:[%s7 + $0x48] sm:$0xff]
    %v1774 = vld [vmem:[%s7 + $0x50] sm:$0xff]
    %v1775 = vld [vmem:[%s7 + $0x58] sm:$0xff]
    %v1776 = vld [vmem:[%s7 + $0x60] sm:$0xff]
    %v1777 = vld [vmem:[%s7 + $0x68] sm:$0xff]
    %v1778 = vld [vmem:[%s7 + $0x70] sm:$0xff]
    %v1779 = vld [vmem:[%s7 + $0x78] sm:$0xff]
    %1780 = vmatprep.subr.mxu0 0.0
    %1781 = vmatpush1.msra.mxu0 %v1779
    %1782 = vmatprep.subr.mxu0 0.0
    %1783 = vmatpush1.msra.mxu0 %v1778
    %1784 = vmatprep.subr.mxu0 0.0
    %1785 = vmatpush1.msra.mxu0 %v1777
    %1786 = vmatprep.subr.mxu0 0.0
    %1787 = vmatpush1.msra.mxu0 %v1776
    %1788 = vmatprep.subr.mxu0 0.0
    %1789 = vmatpush1.msra.mxu0 %v1775
    %1790 = vmatprep.subr.mxu0 0.0
    %1791 = vmatpush1.msra.mxu0 %v1774
    %1792 = vmatprep.subr.mxu0 0.0
    %1793 = vmatpush1.msra.mxu0 %v1773
    %1794 = vmatprep.subr.mxu0 0.0
    %1795 = vmatpush1.msra.mxu0 %v1772
    %1796 = vmatprep.subr.mxu0 0.0
    %1797 = vmatpush1.msra.mxu0 %v1771
    %1798 = vmatprep.subr.mxu0 0.0
    %1799 = vmatpush1.msra.mxu0 %v1770
    %1800 = vmatprep.subr.mxu0 0.0
    %1801 = vmatpush1.msra.mxu0 %v1769
    %1802 = vmatprep.subr.mxu0 0.0
    %1803 = vmatpush1.msra.mxu0 %v1768
    %1804 = vmatprep.subr.mxu0 0.0
    %1805 = vmatpush1.msra.mxu0 %v1767
    %1806 = vmatprep.subr.mxu0 0.0
    %1807 = vmatpush1.msra.mxu0 %v1766
    %1808 = vmatprep.subr.mxu0 0.0
    %1809 = vmatpush1.msra.mxu0 %v1765
    %1810 = vmatprep.subr.mxu0 0.0
    %1811 = vmatpush1.msra.mxu0 %v1764
    %1812 = vmatprep.subr.mxu0 0.0
    %1813 = vmatpush2.msra.mxu0 0.0
    %1814 = vmatprep.subr.mxu0 0.0
    %1815 = vmatpush2.msra.mxu0 0.0
    %1816 = vmatprep.subr.mxu0 0.0
    %1817 = vmatpush2.msra.mxu0 0.0
    %1818 = vmatprep.subr.mxu0 0.0
    %1819 = vmatpush2.msra.mxu0 0.0
    %1820 = vmatprep.subr.mxu0 0.0
    %1821 = vmatpush2.msra.mxu0 0.0
    %1822 = vmatprep.subr.mxu0 0.0
    %1823 = vmatpush2.msra.mxu0 0.0
    %1824 = vmatprep.subr.mxu0 0.0
    %1825 = vmatpush2.msra.mxu0 0.0
    %1826 = vmatprep.subr.mxu0 0.0
    %1827 = vmatpush2.msra.mxu0 0.0
    %1828 = vmatprep.subr.mxu0 0.0
    %1829 = vmatpush2.msra.mxu0 0.0
    %1830 = vmatprep.subr.mxu0 0.0
    %1831 = vmatpush2.msra.mxu0 0.0
    %1832 = vmatprep.subr.mxu0 0.0
    %1833 = vmatpush2.msra.mxu0 0.0
    %1834 = vmatprep.subr.mxu0 0.0
    %1835 = vmatpush2.msra.mxu0 0.0
    %1836 = vmatprep.subr.mxu0 0.0
    %1837 = vmatpush2.msra.mxu0 0.0
    %1838 = vmatprep.subr.mxu0 0.0
    %1839 = vmatpush2.msra.mxu0 0.0
    %1840 = vmatprep.subr.mxu0 0.0
    %1841 = vmatpush2.msra.mxu0 0.0
    %1842 = vmatprep.subr.mxu0 0.0
    %1843 = vmatpush2.msra.mxu0 0.0
    %1844 = vmatprep.mubr.f32.mxu0 0.0
    %1845 = vmatmul.mubr.f32.gmra.mxu0 %v1763
    %v1846 = vpop.f32.mrf.mxu0
    %v1847 = vadd.f32 0.0, %v1846
    %v1848 = vpop.f32.mrf.mxu0
    %1849 = vdwg.mxu0
    %v1850 = vld [vmem:[%s9 + $0x24] ss:$0 sm:$0xff]
    %v1851 = vld [vmem:[%s9 + $0x25] ss:$0 sm:$0xff]
    %vm1852 = vcmask 523264
    %v1853 = vsel %vm1852, %v1847, 0.0
    %v1854 = vrot.slane %v1853, 4
    %v1855 = vadd.f32 %v1853, %v1854
    %v1856 = vrot.slane %v1855, 2
    %v1857 = vadd.f32 %v1855, %v1856
    %v1858 = vrot.slane %v1857, 1
    %v1859 = vadd.f32 %v1857, %v1858
    %v1860 = vmul.f32 %v1859, 0.125
    %v1861 = vmul.f32 %v1847, %v1847
    %v1862 = vsel %vm1852, %v1861, 0.0
    %v1863 = vrot.slane %v1862, 4
    %v1864 = vadd.f32 %v1862, %v1863
    %v1865 = vrot.slane %v1864, 2
    %v1866 = vadd.f32 %v1864, %v1865
    %v1867 = vrot.slane %v1866, 1
    %v1868 = vadd.f32 %v1866, %v1867
    %v1869 = vmul.f32 %v1868, 0.125
    %v1870 = vmul.f32 %v1860, %v1860
    %v1871 = vsub.f32 %v1869, %v1870
    %v1872 = vmax.f32 %v1871, 0.0
    %v1873 = vadd.f32 %v1872, 1e-05
    %v1874 = vrsqrt.pop %v1873
    %v1875 = vmul.f32 %v1850, %v1874
    %v1876 = vmul.f32 %v1847, %v1875
    %v1877 = vmul.f32 %v1860, %v1875
    %v1878 = vsub.f32 %v1851, %v1877
    %v1879 = vadd.f32 %v1876, %v1878
    %v1880 = vmax.f32 %v1879, 0.0
    %v1881 = vld [vmem:[%s8] sm:$0xff]
    %v1882 = vld [vmem:[%s8 + $0x8] sm:$0xff]
    %v1883 = vld [vmem:[%s8 + $0x10] sm:$0xff]
    %v1884 = vld [vmem:[%s8 + $0x18] sm:$0xff]
    %v1885 = vld [vmem:[%s8 + $0x20] sm:$0xff]
    %v1886 = vld [vmem:[%s8 + $0x28] sm:$0xff]
    %v1887 = vld [vmem:[%s8 + $0x30] sm:$0xff]
    %v1888 = vld [vmem:[%s8 + $0x38] sm:$0xff]
    %v1889 = vld [vmem:[%s9 + $0x26] ss:$0 sm:$0xff]
    %v1891 = vsel %vm1852, %v1880, 0
    %1893 = vmatprep.subr.mxu0 0.0
    %1894 = vmatpush1.msra.mxu0 0.0
    %1895 = vmatprep.subr.mxu0 0.0
    %1896 = vmatpush1.msra.mxu0 0.0
    %1897 = vmatprep.subr.mxu0 0.0
    %1898 = vmatpush1.msra.mxu0 0.0
    %1899 = vmatprep.subr.mxu0 0.0
    %1900 = vmatpush1.msra.mxu0 0.0
    %1901 = vmatprep.subr.mxu0 0.0
    %1902 = vmatpush1.msra.mxu0 0.0
    %1903 = vmatprep.subr.mxu0 0.0
    %1904 = vmatpush1.msra.mxu0 0.0
    %1905 = vmatprep.subr.mxu0 0.0
    %1906 = vmatpush1.msra.mxu0 0.0
    %1907 = vmatprep.subr.mxu0 0.0
    %1908 = vmatpush1.msra.mxu0 0.0
    %1909 = vmatprep.subr.mxu0 0.0
    %1910 = vmatpush1.msra.mxu0 %v1888
    %1911 = vmatprep.subr.mxu0 0.0
    %1912 = vmatpush1.msra.mxu0 %v1887
    %1913 = vmatprep.subr.mxu0 0.0
    %1914 = vmatpush1.msra.mxu0 %v1886
    %1915 = vmatprep.subr.mxu0 0.0
    %1916 = vmatpush1.msra.mxu0 %v1885
    %1917 = vmatprep.subr.mxu0 0.0
    %1918 = vmatpush1.msra.mxu0 %v1884
    %1919 = vmatprep.subr.mxu0 0.0
    %1920 = vmatpush1.msra.mxu0 %v1883
    %1921 = vmatprep.subr.mxu0 0.0
    %1922 = vmatpush1.msra.mxu0 %v1882
    %1923 = vmatprep.subr.mxu0 0.0
    %1924 = vmatpush1.msra.mxu0 %v1881
    %1925 = vmatprep.subr.mxu0 0.0
    %1926 = vmatpush2.msra.mxu0 0.0
    %1927 = vmatprep.subr.mxu0 0.0
    %1928 = vmatpush2.msra.mxu0 0.0
    %1929 = vmatprep.subr.mxu0 0.0
    %1930 = vmatpush2.msra.mxu0 0.0
    %1931 = vmatprep.subr.mxu0 0.0
    %1932 = vmatpush2.msra.mxu0 0.0
    %1933 = vmatprep.subr.mxu0 0.0
    %1934 = vmatpush2.msra.mxu0 0.0
    %1935 = vmatprep.subr.mxu0 0.0
    %1936 = vmatpush2.msra.mxu0 0.0
    %1937 = vmatprep.subr.mxu0 0.0
    %1938 = vmatpush2.msra.mxu0 0.0
    %1939 = vmatprep.subr.mxu0 0.0
    %1940 = vmatpush2.msra.mxu0 0.0
    %1941 = vmatprep.subr.mxu0 0.0
    %1942 = vmatpush2.msra.mxu0 0.0
    %1943 = vmatprep.subr.mxu0 0.0
    %1944 = vmatpush2.msra.mxu0 0.0
    %1945 = vmatprep.subr.mxu0 0.0
    %1946 = vmatpush2.msra.mxu0 0.0
    %1947 = vmatprep.subr.mxu0 0.0
    %1948 = vmatpush2.msra.mxu0 0.0
    %1949 = vmatprep.subr.mxu0 0.0
    %1950 = vmatpush2.msra.mxu0 0.0
    %1951 = vmatprep.subr.mxu0 0.0
    %1952 = vmatpush2.msra.mxu0 0.0
    %1953 = vmatprep.subr.mxu0 0.0
    %1954 = vmatpush2.msra.mxu0 0.0
    %1955 = vmatprep.subr.mxu0 0.0
    %1956 = vmatpush2.msra.mxu0 0.0
    %1957 = vmatprep.mubr.f32.mxu0 0.0
    %1958 = vmatmul.mubr.f32.gmra.mxu0 %v1891
    %v1959 = vpop.f32.mrf.mxu0
    %v1960 = vadd.f32 %v1889, %v1959
    %v1961 = vpop.f32.mrf.mxu0
    %1962 = vdwg.mxu0
    %v1963 = vlaneseq
    %v1964 = vand.u32 %v1963, 127
    %vm1965 = vcmp.lt.s32.totalorder %v1964, 2
    %v1966 = vsel %vm1965, 1, 0
    %v1967 = vcvt.s32.f32 %v1966
    %1968 = vadd.xlane.f32.xlu0 %v1960
    %v1969 = vpop.xlane.xlu0 %1968
    %v1970 = vmul.f32 %v1969, 0.5
    %v1971 = vsub.f32 %v1960, %v1970
    %v1972 = vmul.f32 %v1971, %v1971
    %v1973 = vmul.f32 %v1972, %v1967
    %1974 = vadd.xlane.f32.xlu0 %v1973
    %v1975 = vpop.xlane.xlu0 %1974
    %v1976 = vmul.f32 %v1975, 0.5
    %v1977 = vadd.f32 %v1976, 1e-05
    %v1978 = vrsqrt.pop %v1977
    %v1979 = vmul.f32 %v1971, %v1978
    %v1980 = vld [vmem:[%s9 + $0x27] ss:$0 sm:$0xff]
    %v1981 = vmul.f32 %v1979, %v1980
    %v1982 = vld [vmem:[%s9 + $0x40] ss:$0 sm:$0xff]
    %v1983 = vadd.f32 %v1981, %v1982
    %1984 = vst [vmem:[#allocation13] sm:$0xff] %v1983
    // Predicated region
    $region66: #{tpu_custom_call.1} parent=1 // pred_check
      _
    $region67: #{tpu_custom_call.1} parent=1 // pred_check_branch
      %1986 = sbr.rel (0) target = $region69
    $region68: #{tpu_custom_call.1} parent=1 // pred_region
      %s1988 = ssub.s32 128, 128
      %1989 = vsyncadd [#allocation4], %s1988
      %s1991 = sshll.u32 [#allocation13], 4
      %s1992 = int_to_ptr.vmem [resolvable:$true] %s1991
      %1994 = dma.vmem_to_hbm [thread:$0]  %s1992, 128, %s10, [#allocation4]
    $region69: #{tpu_custom_call.1} parent=1 // pred_fallthru
      _
    // Predicated region
    $region70: #{tpu_custom_call.1} parent=1 // pred_check
      _
    $region71: #{tpu_custom_call.1} parent=1 // pred_check_branch
      %1996 = sbr.rel (0) target = $region73
    $region72: #{tpu_custom_call.1} parent=1 // pred_region
      %1997 = dma.done [#allocation4], 128
    $region73: #{tpu_custom_call.1} parent=1 // pred_fallthru
      _
    %1998 = vsyncpa [#allocation3], 1
    %1999 = vsyncpa [#allocation6], 1
    %2000 = vsyncpa [#allocation9], 1
    %2001 = vsyncpa [#allocation12], 1
    %2002 = vsyncpa [#allocation4], 1

</llo_original>
